<compile_context>
chip_gen: v7x
topology: tpu7x:2x2x1
jax: 0.10.0
libtpu: 0.0.40
codegen_flags: <defaults>
</compile_context>

<pallas_src>
import jax
import jax.numpy as jnp
import numpy as np
from jax import lax
from jax.experimental import pallas as pl
from jax.experimental.pallas import tpu as pltpu


# ----------------------------- Pallas kernel --------------------------------

def _dual_down_kernel(x1b_ref, x1h_ref, x2_ref, w1_ref, b1_ref,
                      w2a_ref, w2b_ref, b2_ref, o_ref):
    """One (batch image, T output rows) tile of the fused module.

    x1b_ref : (1, 2*T, OW+1, 2*C1) bf16  padded, column-phase-packed x1 rows
    x1h_ref : (1, 2,   OW+1, 2*C1) bf16  halo row pair (only phase-0 used)
    x2_ref  : (1, C2, T*OW)        f32   x2 in native NCHW (pixels in lanes)
    w1_ref  : (6, 2*C1, C1)        bf16  conv1 taps: [dy][ow-offset] stacked
    b1_ref  : (1, C1)              f32
    w2a_ref : (Cout, C1)           bf16  conv2 rows acting on conv1 output
    w2b_ref : (Cout, C2)           bf16  conv2 rows acting on x2
    b2_ref  : (Cout, 1)            f32
    o_ref   : (1, Cout, T*OW)            output tile, already NCHW-flat
    """
    two_t, owp, c1x2 = x1b_ref.shape[1], x1b_ref.shape[2], x1b_ref.shape[3]
    t = two_t // 2
    ow = owp - 1
    p = t * ow

    # Row-phase split (free reshape of leading dims).
    xb = x1b_ref[0].reshape(t, 2, owp, c1x2)
    r0 = xb[:, 0]                       # padded rows 2*oy     (tap dy = 0)
    r1 = xb[:, 1]                       # padded rows 2*oy + 1 (tap dy = 1)
    h0 = x1h_ref[0][0:1]                # padded row 2*T*(i+1), phase 0
    if t == 1:
        r2 = h0
    else:
        r2 = jnp.concatenate([r0[1:], h0], axis=0)   # rows 2*oy + 2 (dy = 2)

    # Conv1 (3x3 stride-2 pad-1): 6 accumulating matmuls, f32 accumulation.
    # a0 carries column taps dx=0,1 (both phases in lanes); a1 carries dx=2
    # (phase-0 lanes; phase-1 weight rows are zero).
    acc = None
    for dy, r in enumerate((r0, r1, r2)):
        a0 = r[:, 0:ow, :].reshape(p, c1x2)
        a1 = r[:, 1:ow + 1, :].reshape(p, c1x2)
        d = jnp.dot(a0, w1_ref[2 * dy], preferred_element_type=jnp.float32)
        d = d + jnp.dot(a1, w1_ref[2 * dy + 1],
                        preferred_element_type=jnp.float32)
        acc = d if acc is None else acc + d
    h = jnp.maximum(acc + b1_ref[...], 0.0).astype(jnp.bfloat16)   # (p, C1)
    # TODO(synk): Dropout2d is identity at inference; training-mode channel
    #             dropout (and its PRNG) is not implemented here.

    # Conv2 (1x1) over concat([conv1_out, x2], channel) == split-K matmuls,
    # computed transposed so the store is directly NCHW / lane-dense.
    x2v = x2_ref[0].astype(jnp.bfloat16)                            # (C2, p)
    y = jnp.dot(w2a_ref[...], h.T, preferred_element_type=jnp.float32)
    y = y + jnp.dot(w2b_ref[...], x2v, preferred_element_type=jnp.float32)
    y = jnp.maximum(y + b2_ref[...], 0.0)                           # (Cout, p)
    o_ref[0] = y.astype(o_ref.dtype)


# ------------------------------ tiling helper --------------------------------

def _choose_tile_rows(oh, ow, n, target_pixels=2048):
    """Output rows per tile: prefer T | OH (no ragged tail), a lane-dense
    output block (T*OW % 128 == 0) when the image is split, ~target_pixels
    pixels per tile, and a total grid of >= 2 steps (v7x megacore)."""
    divs = [t for t in range(1, oh + 1) if oh % t == 0]
    good = [t for t in divs
            if (t * ow) % 128 == 0 and t * ow <= max(target_pixels, 128)]
    t = max(good) if good else oh      # fallback: one row-tile per image
    if n * (oh // t) < 2:
        smaller = [d for d in good if d < t]
        if smaller:
            t = max(smaller)
    # TODO(synk): images with no suitable divisor fall back to one row-tile
    #             per image; a masked ragged-tail tile would generalize this.
    return t


# ------------------------------ wrapper --------------------------------------

def dual_down_forward_pallas(x1_nchw, x2_nchw, params, *,
                             target_pixels=2048, out_dtype=jnp.float32):
    """dual_down forward.  x1: (N, C1, H, W), x2: (N, C2, ceil(H/2), ceil(W/2)).
    Returns NCHW (N, Cout, OH, OW).  out_dtype=jnp.bfloat16 halves output HBM
    bytes if downstream tolerates it."""
    N, C1, H, W = x1_nchw.shape
    OH, OW = (H + 1) // 2, (W + 1) // 2
    assert x2_nchw.shape[0] == N and x2_nchw.shape[2:] == (OH, OW), x2_nchw.shape
    C2 = x2_nchw.shape[1]
    Cout = params['w2'].shape[0]
    assert params['w2'].shape[1] == C1 + C2

    T = _choose_tile_rows(OH, OW, N, target_pixels)
    n_tiles = -(-OH // T)
    RT = n_tiles * T
    OWp = OW + 1
    Hp = 2 * RT + 2                     # covers body rows + 1-row halo
    P = T * OW

    # x1: NCHW -> NHWC, cast bf16, 1-px pad, column-phase pack.  The transpose
    # + cast + pad fuse into one XLA copy pass; the pack is a free reshape.
    # TODO(synk): keeping the surrounding graph NHWC would remove this pass.
    x1 = jnp.transpose(x1_nchw, (0, 2, 3, 1)).astype(jnp.bfloat16)
    x1 = jnp.pad(x1, ((0, 0), (1, Hp - 1 - H), (1, 2 * OWp - 1 - W), (0, 0)))
    x1k = x1.reshape(N, Hp, OWp, 2 * C1)

    # x2: native NCHW, flattened pixels (free reshape); cast to bf16 in-kernel
    # to avoid an extra HBM pass.
    x2r = x2_nchw.astype(jnp.float32).reshape(N, C2, OH * OW)

    # Weights.  conv1 taps stacked as [dy=0:(dx0,dx1), dy=0:(dx2,0), dy=1:...].
    w1 = params['w1'].astype(jnp.float32)                     # (C1, C1, 3, 3)
    zpad = jnp.zeros((C1, C1), jnp.float32)
    taps = []
    for dy in range(3):
        taps.append(jnp.concatenate([w1[:, :, dy, 0].T, w1[:, :, dy, 1].T], 0))
        taps.append(jnp.concatenate([w1[:, :, dy, 2].T, zpad], 0))
    w1k = jnp.stack(taps, 0).astype(jnp.bfloat16)             # (6, 2*C1, C1)
    b1 = params['b1'].reshape(1, C1).astype(jnp.float32)
    w2 = params['w2'][:, :, 0, 0]                             # (Cout, C1+C2)
    w2a = w2[:, :C1].astype(jnp.bfloat16)                     # (Cout, C1)
    w2b = w2[:, C1:].astype(jnp.bfloat16)                     # (Cout, C2)
    b2 = params['b2'].reshape(Cout, 1).astype(jnp.float32)

    # VMEM budget (double-buffered tiles + weights + headroom); raise the
    # scoped limit only when needed, with headroom for v7x (64 MiB physical).
    out_isz = jnp.dtype(out_dtype).itemsize
    tile_bytes = (2 * T * OWp * 2 * C1 * 2 + 2 * OWp * 2 * C1 * 2
                  + C2 * P * 4 + Cout * P * out_isz)
    est_vmem = 2 * tile_bytes + w1k.size * 2 + 4 * P * (2 * C1 + C1 + Cout) \
        + (2 << 20)
    vmem_limit = None
    if est_vmem > 12 * 2**20:
        vmem_limit = min(2 * est_vmem, 60 * 2**20)

    out = pl.pallas_call(
        _dual_down_kernel,
        out_shape=jax.ShapeDtypeStruct((N, Cout, RT * OW), out_dtype),
        grid_spec=pltpu.PrefetchScalarGridSpec(
            num_scalar_prefetch=0,
            grid=(N, n_tiles),
            in_specs=[
                # x1 body: 2*T padded rows per tile.
                pl.BlockSpec((1, 2 * T, OWp, 2 * C1),
                             lambda n, i: (n, i, 0, 0)),
                # x1 halo: the row pair starting at padded row 2*T*(i+1).
                pl.BlockSpec((1, 2, OWp, 2 * C1),
                             lambda n, i: (n, T * (i + 1), 0, 0)),
                # x2: native NCHW, T*OW pixels per tile.
                pl.BlockSpec((1, C2, P), lambda n, i: (n, 0, i)),
                # weights / biases: resident.
                pl.BlockSpec((6, 2 * C1, C1), lambda n, i: (0, 0, 0)),
                pl.BlockSpec((1, C1), lambda n, i: (0, 0)),
                pl.BlockSpec((Cout, C1), lambda n, i: (0, 0)),
                pl.BlockSpec((Cout, C2), lambda n, i: (0, 0)),
                pl.BlockSpec((Cout, 1), lambda n, i: (0, 0)),
            ],
            out_specs=pl.BlockSpec((1, Cout, P), lambda n, i: (n, 0, i)),
        ),
        compiler_params=pltpu.CompilerParams(
            dimension_semantics=("parallel", "parallel"),
            vmem_limit_bytes=vmem_limit),
    )(x1k, x1k, x2r, w1k, b1, w2a, w2b, b2)

    if RT != OH:                         # ragged fallback only; chooser avoids it
        out = out[:, :, :OH * OW]
    return out.reshape(N, Cout, OH, OW)  # free reshape - already NCHW


# ------------------------- pure-JAX reference --------------------------------

def dual_down_ref(x1_nchw, x2_nchw, params):
    y1 = lax.conv_general_dilated(
        x1_nchw.astype(jnp.float32), params['w1'], window_strides=(2, 2),
        padding=((1, 1), (1, 1)),
        dimension_numbers=('NCHW', 'OIHW', 'NCHW'),
        precision=lax.Precision.HIGHEST)
    y1 = jnp.maximum(y1 + params['b1'][None, :, None, None], 0.0)
    x = jnp.concatenate([y1, x2_nchw.astype(jnp.float32)], axis=1)
    y = lax.conv_general_dilated(
        x, params['w2'], window_strides=(1, 1), padding=((0, 0), (0, 0)),
        dimension_numbers=('NCHW', 'OIHW', 'NCHW'),
        precision=lax.Precision.HIGHEST)
    return jnp.maximum(y + params['b2'][None, :, None, None], 0.0)


# ------------------------- parameter initialization --------------------------

def init_params(key, in_ch, out_ch):
    ks = jax.random.split(key, 4)
    return {
        # conv1: Conv2d(in_ch, in_ch, 3, stride=2, padding=1)  (OIHW + bias)
        'w1': 0.1 * jax.random.normal(ks[0], (in_ch, in_ch, 3, 3), jnp.float32),
        'b1': 0.1 * jax.random.normal(ks[1], (in_ch,), jnp.float32),
        # conv2: Conv2d(2*in_ch, out_ch, 1)                    (OIHW + bias)
        'w2': 0.1 * jax.random.normal(ks[2], (out_ch, 2 * in_ch, 1, 1),
                                      jnp.float32),
        'b2': 0.1 * jax.random.normal(ks[3], (out_ch,), jnp.float32),
    }


# ---------------------------------- main --------------------------------------

if __name__ == "__main__":
    in_ch, out_ch = 4, 8
    N, H, W = 2, 16, 16

    key = jax.random.PRNGKey(0)
    k1, k2, kp = jax.random.split(key, 3)
    # NCHW inputs (PyTorch convention).  conv1 halves x1's spatial dims, so x2
    # must already be at (H/2, W/2) with in_ch channels.
    x1 = jax.random.normal(k1, (N, in_ch, H, W), jnp.float32)
    x2 = jax.random.normal(k2, (N, in_ch, H // 2, W // 2), jnp.float32)
    params = init_params(kp, in_ch, out_ch)

    out = jax.block_until_ready(dual_down_forward_pallas(x1, x2, params))
    ref = dual_down_ref(x1, x2, params)

    assert out.shape == (N, out_ch, H // 2, W // 2), out.shape
    # Accuracy contract: matmul operands run in bf16 on the MXU (f32 accum),
    # so the comparison against the f32 HIGHEST reference uses 2e-2 tolerances.
    if not np.allclose(np.asarray(out), np.asarray(ref), atol=2e-2, rtol=2e-2):
        err = float(jnp.max(jnp.abs(out.astype(jnp.float32) - ref)))
        raise AssertionError(f"Pallas output mismatch vs reference, "
                             f"max abs err = {err}")
    print("KERNEL_OK")
</pallas_src>

<mosaic_0001>
module attributes {stable_mosaic.version = 11 : i64} {
  func.func @_dual_down_kernel(%arg0: i32, %arg1: i32, %arg2: memref<1x16x9x8xbf16, #tpu.memory_space<vmem>>, %arg3: memref<1x2x9x8xbf16, #tpu.memory_space<vmem>>, %arg4: memref<1x4x64xf32, #tpu.memory_space<vmem>>, %arg5: memref<6x8x4xbf16, #tpu.memory_space<vmem>>, %arg6: memref<1x4xf32, #tpu.memory_space<vmem>>, %arg7: memref<8x4xbf16, #tpu.memory_space<vmem>>, %arg8: memref<8x4xbf16, #tpu.memory_space<vmem>>, %arg9: memref<8x1xf32, #tpu.memory_space<vmem>>, %arg10: memref<1x8x64xf32, #tpu.memory_space<vmem>>) attributes {dimension_semantics = [#tpu.dimension_semantics<parallel>, #tpu.dimension_semantics<parallel>], iteration_bounds = array<i64: 2, 1>, scalar_prefetch = 0 : i64, scratch_operands = 0 : i64, tpu.core_type = #tpu.core_type<tc>, window_params = [{transform_indices = @transform_0, window_bounds = array<i64: 1, 16, 9, 8>}, {transform_indices = @transform_1, window_bounds = array<i64: 1, 2, 9, 8>}, {transform_indices = @transform_2, window_bounds = array<i64: 1, 4, 64>}, {pipeline_mode = #tpu.pipeline_mode<synchronous>, transform_indices = @transform_3, window_bounds = array<i64: 6, 8, 4>}, {pipeline_mode = #tpu.pipeline_mode<synchronous>, transform_indices = @transform_4, window_bounds = array<i64: 1, 4>}, {pipeline_mode = #tpu.pipeline_mode<synchronous>, transform_indices = @transform_5, window_bounds = array<i64: 8, 4>}, {pipeline_mode = #tpu.pipeline_mode<synchronous>, transform_indices = @transform_6, window_bounds = array<i64: 8, 4>}, {pipeline_mode = #tpu.pipeline_mode<synchronous>, transform_indices = @transform_7, window_bounds = array<i64: 8, 1>}, {transform_indices = @transform_8, window_bounds = array<i64: 1, 8, 64>}]} {
    %c0 = arith.constant 0 : index
    %c0_0 = arith.constant 0 : index
    %c0_1 = arith.constant 0 : index
    %c0_2 = arith.constant 0 : index
    %0 = vector.load %arg2[%c0, %c0_0, %c0_1, %c0_2] : memref<1x16x9x8xbf16, #tpu.memory_space<vmem>>, vector<1x16x9x8xbf16>
    %1 = vector.shape_cast %0 : vector<1x16x9x8xbf16> to vector<16x9x8xbf16>
    %2 = vector.shape_cast %1 : vector<16x9x8xbf16> to vector<8x2x9x8xbf16>
    %3 = vector.extract_strided_slice %2 {offsets = [0, 0, 0, 0], sizes = [8, 1, 9, 8], strides = [1, 1, 1, 1]} : vector<8x2x9x8xbf16> to vector<8x1x9x8xbf16>
    %4 = vector.shape_cast %3 : vector<8x1x9x8xbf16> to vector<8x9x8xbf16>
    %5 = vector.extract_strided_slice %2 {offsets = [0, 1, 0, 0], sizes = [8, 1, 9, 8], strides = [1, 1, 1, 1]} : vector<8x2x9x8xbf16> to vector<8x1x9x8xbf16>
    %6 = vector.shape_cast %5 : vector<8x1x9x8xbf16> to vector<8x9x8xbf16>
    %c0_3 = arith.constant 0 : index
    %c0_4 = arith.constant 0 : index
    %c0_5 = arith.constant 0 : index
    %c0_6 = arith.constant 0 : index
    %7 = vector.load %arg3[%c0_3, %c0_4, %c0_5, %c0_6] : memref<1x2x9x8xbf16, #tpu.memory_space<vmem>>, vector<1x2x9x8xbf16>
    %8 = vector.shape_cast %7 : vector<1x2x9x8xbf16> to vector<2x9x8xbf16>
    %9 = vector.extract_strided_slice %8 {offsets = [0, 0, 0], sizes = [1, 9, 8], strides = [1, 1, 1]} : vector<2x9x8xbf16> to vector<1x9x8xbf16>
    %10 = vector.extract_strided_slice %4 {offsets = [1, 0, 0], sizes = [7, 9, 8], strides = [1, 1, 1]} : vector<8x9x8xbf16> to vector<7x9x8xbf16>
    %11 = tpu.concatenate %10, %9 in 0 : vector<7x9x8xbf16>, vector<1x9x8xbf16> -> vector<8x9x8xbf16>
    %12 = vector.extract_strided_slice %4 {offsets = [0, 0, 0], sizes = [8, 8, 8], strides = [1, 1, 1]} : vector<8x9x8xbf16> to vector<8x8x8xbf16>
    %13 = vector.shape_cast %12 : vector<8x8x8xbf16> to vector<64x8xbf16>
    %14 = vector.extract_strided_slice %4 {offsets = [0, 1, 0], sizes = [8, 8, 8], strides = [1, 1, 1]} : vector<8x9x8xbf16> to vector<8x8x8xbf16>
    %15 = vector.shape_cast %14 : vector<8x8x8xbf16> to vector<64x8xbf16>
    %c0_7 = arith.constant 0 : index
    %c0_8 = arith.constant 0 : index
    %c0_9 = arith.constant 0 : index
    %16 = vector.load %arg5[%c0_7, %c0_8, %c0_9] : memref<6x8x4xbf16, #tpu.memory_space<vmem>>, vector<1x8x4xbf16>
    %17 = vector.shape_cast %16 : vector<1x8x4xbf16> to vector<8x4xbf16>
    %cst = arith.constant dense<0.000000e+00> : vector<64x4xf32>
    %18 = tpu.matmul %13, %17, %cst {dimension_numbers = #tpu.dot_dimension_numbers<[1], [0], [0], [1], [0, 0, 1, 1], [], []>} : vector<64x8xbf16>, vector<8x4xbf16>, vector<64x4xf32> -> vector<64x4xf32>
    %c1 = arith.constant 1 : index
    %c0_10 = arith.constant 0 : index
    %c0_11 = arith.constant 0 : index
    %19 = vector.load %arg5[%c1, %c0_10, %c0_11] : memref<6x8x4xbf16, #tpu.memory_space<vmem>>, vector<1x8x4xbf16>
    %20 = vector.shape_cast %19 : vector<1x8x4xbf16> to vector<8x4xbf16>
    %cst_12 = arith.constant dense<0.000000e+00> : vector<64x4xf32>
    %21 = tpu.matmul %15, %20, %cst_12 {dimension_numbers = #tpu.dot_dimension_numbers<[1], [0], [0], [1], [0, 0, 1, 1], [], []>} : vector<64x8xbf16>, vector<8x4xbf16>, vector<64x4xf32> -> vector<64x4xf32>
    %22 = arith.addf %18, %21 : vector<64x4xf32>
    %23 = vector.extract_strided_slice %6 {offsets = [0, 0, 0], sizes = [8, 8, 8], strides = [1, 1, 1]} : vector<8x9x8xbf16> to vector<8x8x8xbf16>
    %24 = vector.shape_cast %23 : vector<8x8x8xbf16> to vector<64x8xbf16>
    %25 = vector.extract_strided_slice %6 {offsets = [0, 1, 0], sizes = [8, 8, 8], strides = [1, 1, 1]} : vector<8x9x8xbf16> to vector<8x8x8xbf16>
    %26 = vector.shape_cast %25 : vector<8x8x8xbf16> to vector<64x8xbf16>
    %c2 = arith.constant 2 : index
    %c0_13 = arith.constant 0 : index
    %c0_14 = arith.constant 0 : index
    %27 = vector.load %arg5[%c2, %c0_13, %c0_14] : memref<6x8x4xbf16, #tpu.memory_space<vmem>>, vector<1x8x4xbf16>
    %28 = vector.shape_cast %27 : vector<1x8x4xbf16> to vector<8x4xbf16>
    %cst_15 = arith.constant dense<0.000000e+00> : vector<64x4xf32>
    %29 = tpu.matmul %24, %28, %cst_15 {dimension_numbers = #tpu.dot_dimension_numbers<[1], [0], [0], [1], [0, 0, 1, 1], [], []>} : vector<64x8xbf16>, vector<8x4xbf16>, vector<64x4xf32> -> vector<64x4xf32>
    %c3 = arith.constant 3 : index
    %c0_16 = arith.constant 0 : index
    %c0_17 = arith.constant 0 : index
    %30 = vector.load %arg5[%c3, %c0_16, %c0_17] : memref<6x8x4xbf16, #tpu.memory_space<vmem>>, vector<1x8x4xbf16>
    %31 = vector.shape_cast %30 : vector<1x8x4xbf16> to vector<8x4xbf16>
    %cst_18 = arith.constant dense<0.000000e+00> : vector<64x4xf32>
    %32 = tpu.matmul %26, %31, %cst_18 {dimension_numbers = #tpu.dot_dimension_numbers<[1], [0], [0], [1], [0, 0, 1, 1], [], []>} : vector<64x8xbf16>, vector<8x4xbf16>, vector<64x4xf32> -> vector<64x4xf32>
    %33 = arith.addf %29, %32 : vector<64x4xf32>
    %34 = arith.addf %22, %33 : vector<64x4xf32>
    %35 = vector.extract_strided_slice %11 {offsets = [0, 0, 0], sizes = [8, 8, 8], strides = [1, 1, 1]} : vector<8x9x8xbf16> to vector<8x8x8xbf16>
    %36 = vector.shape_cast %35 : vector<8x8x8xbf16> to vector<64x8xbf16>
    %37 = vector.extract_strided_slice %11 {offsets = [0, 1, 0], sizes = [8, 8, 8], strides = [1, 1, 1]} : vector<8x9x8xbf16> to vector<8x8x8xbf16>
    %38 = vector.shape_cast %37 : vector<8x8x8xbf16> to vector<64x8xbf16>
    %c4 = arith.constant 4 : index
    %c0_19 = arith.constant 0 : index
    %c0_20 = arith.constant 0 : index
    %39 = vector.load %arg5[%c4, %c0_19, %c0_20] : memref<6x8x4xbf16, #tpu.memory_space<vmem>>, vector<1x8x4xbf16>
    %40 = vector.shape_cast %39 : vector<1x8x4xbf16> to vector<8x4xbf16>
    %cst_21 = arith.constant dense<0.000000e+00> : vector<64x4xf32>
    %41 = tpu.matmul %36, %40, %cst_21 {dimension_numbers = #tpu.dot_dimension_numbers<[1], [0], [0], [1], [0, 0, 1, 1], [], []>} : vector<64x8xbf16>, vector<8x4xbf16>, vector<64x4xf32> -> vector<64x4xf32>
    %c5 = arith.constant 5 : index
    %c0_22 = arith.constant 0 : index
    %c0_23 = arith.constant 0 : index
    %42 = vector.load %arg5[%c5, %c0_22, %c0_23] : memref<6x8x4xbf16, #tpu.memory_space<vmem>>, vector<1x8x4xbf16>
    %43 = vector.shape_cast %42 : vector<1x8x4xbf16> to vector<8x4xbf16>
    %cst_24 = arith.constant dense<0.000000e+00> : vector<64x4xf32>
    %44 = tpu.matmul %38, %43, %cst_24 {dimension_numbers = #tpu.dot_dimension_numbers<[1], [0], [0], [1], [0, 0, 1, 1], [], []>} : vector<64x8xbf16>, vector<8x4xbf16>, vector<64x4xf32> -> vector<64x4xf32>
    %45 = arith.addf %41, %44 : vector<64x4xf32>
    %46 = arith.addf %34, %45 : vector<64x4xf32>
    %c0_25 = arith.constant 0 : index
    %c0_26 = arith.constant 0 : index
    %47 = vector.load %arg6[%c0_25, %c0_26] : memref<1x4xf32, #tpu.memory_space<vmem>>, vector<1x4xf32>
    %48 = vector.broadcast %47 : vector<1x4xf32> to vector<64x4xf32>
    %49 = arith.addf %46, %48 : vector<64x4xf32>
    %cst_27 = arith.constant 0.000000e+00 : f32
    %50 = vector.broadcast %cst_27 : f32 to vector<64x4xf32>
    %51 = arith.maximumf %49, %50 : vector<64x4xf32>
    %52 = arith.truncf %51 : vector<64x4xf32> to vector<64x4xbf16>
    %c0_28 = arith.constant 0 : index
    %c0_29 = arith.constant 0 : index
    %c0_30 = arith.constant 0 : index
    %53 = vector.load %arg4[%c0_28, %c0_29, %c0_30] : memref<1x4x64xf32, #tpu.memory_space<vmem>>, vector<1x4x64xf32>
    %54 = vector.shape_cast %53 : vector<1x4x64xf32> to vector<4x64xf32>
    %55 = arith.truncf %54 : vector<4x64xf32> to vector<4x64xbf16>
    %c0_31 = arith.constant 0 : index
    %c0_32 = arith.constant 0 : index
    %56 = vector.load %arg7[%c0_31, %c0_32] : memref<8x4xbf16, #tpu.memory_space<vmem>>, vector<8x4xbf16>
    %57 = tpu.transpose %52, [1, 0] : vector<64x4xbf16> -> vector<4x64xbf16>
    %cst_33 = arith.constant dense<0.000000e+00> : vector<8x64xf32>
    %58 = tpu.matmul %56, %57, %cst_33 {dimension_numbers = #tpu.dot_dimension_numbers<[1], [0], [0], [1], [0, 0, 1, 1], [], []>} : vector<8x4xbf16>, vector<4x64xbf16>, vector<8x64xf32> -> vector<8x64xf32>
    %c0_34 = arith.constant 0 : index
    %c0_35 = arith.constant 0 : index
    %59 = vector.load %arg8[%c0_34, %c0_35] : memref<8x4xbf16, #tpu.memory_space<vmem>>, vector<8x4xbf16>
    %cst_36 = arith.constant dense<0.000000e+00> : vector<8x64xf32>
    %60 = tpu.matmul %59, %55, %cst_36 {dimension_numbers = #tpu.dot_dimension_numbers<[1], [0], [0], [1], [0, 0, 1, 1], [], []>} : vector<8x4xbf16>, vector<4x64xbf16>, vector<8x64xf32> -> vector<8x64xf32>
    %61 = arith.addf %58, %60 : vector<8x64xf32>
    %c0_37 = arith.constant 0 : index
    %c0_38 = arith.constant 0 : index
    %62 = vector.load %arg9[%c0_37, %c0_38] : memref<8x1xf32, #tpu.memory_space<vmem>>, vector<8x1xf32>
    %63 = vector.broadcast %62 : vector<8x1xf32> to vector<8x64xf32>
    %64 = arith.addf %61, %63 : vector<8x64xf32>
    %cst_39 = arith.constant 0.000000e+00 : f32
    %65 = vector.broadcast %cst_39 : f32 to vector<8x64xf32>
    %66 = arith.maximumf %64, %65 : vector<8x64xf32>
    %c0_40 = arith.constant 0 : index
    %c0_41 = arith.constant 0 : index
    %c0_42 = arith.constant 0 : index
    %67 = vector.load %arg10[%c0_40, %c0_41, %c0_42] : memref<1x8x64xf32, #tpu.memory_space<vmem>>, vector<1x8x64xf32>
    %68 = vector.shape_cast %67 : vector<1x8x64xf32> to vector<8x64xf32>
    %69 = vector.shape_cast %66 : vector<8x64xf32> to vector<1x8x64xf32>
    tpu.vector_store %arg10[%c0_40, %c0_41, %c0_42], %69 {strides = array<i32>} : memref<1x8x64xf32, #tpu.memory_space<vmem>>, vector<1x8x64xf32>,
    return
  }
  func.func @transform_0(%arg0: i32, %arg1: i32) -> (i32, i32, i32, i32) {
    %c0_i32 = arith.constant 0 : i32
    %c0_i32_0 = arith.constant 0 : i32
    %c0_i32_1 = arith.constant 0 : i32
    return %arg0, %arg1, %c0_i32, %c0_i32_0 : i32, i32, i32, i32
  }
  func.func @transform_1(%arg0: i32, %arg1: i32) -> (i32, i32, i32, i32) {
    %c1_i32 = arith.constant 1 : i32
    %0 = arith.addi %arg1, %c1_i32 : i32
    %c8_i32 = arith.constant 8 : i32
    %1 = arith.muli %c8_i32, %0 : i32
    %c0_i32 = arith.constant 0 : i32
    %c0_i32_0 = arith.constant 0 : i32
    %c0_i32_1 = arith.constant 0 : i32
    return %arg0, %1, %c0_i32, %c0_i32_0 : i32, i32, i32, i32
  }
  func.func @transform_2(%arg0: i32, %arg1: i32) -> (i32, i32, i32) {
    %c0_i32 = arith.constant 0 : i32
    %c0_i32_0 = arith.constant 0 : i32
    return %arg0, %c0_i32, %arg1 : i32, i32, i32
  }
  func.func @transform_3(%arg0: i32, %arg1: i32) -> (i32, i32, i32) {
    %c0_i32 = arith.constant 0 : i32
    %c0_i32_0 = arith.constant 0 : i32
    %c0_i32_1 = arith.constant 0 : i32
    %c0_i32_2 = arith.constant 0 : i32
    return %c0_i32, %c0_i32_0, %c0_i32_1 : i32, i32, i32
  }
  func.func @transform_4(%arg0: i32, %arg1: i32) -> (i32, i32) {
    %c0_i32 = arith.constant 0 : i32
    %c0_i32_0 = arith.constant 0 : i32
    %c0_i32_1 = arith.constant 0 : i32
    return %c0_i32, %c0_i32_0 : i32, i32
  }
  func.func @transform_5(%arg0: i32, %arg1: i32) -> (i32, i32) {
    %c0_i32 = arith.constant 0 : i32
    %c0_i32_0 = arith.constant 0 : i32
    %c0_i32_1 = arith.constant 0 : i32
    return %c0_i32, %c0_i32_0 : i32, i32
  }
  func.func @transform_6(%arg0: i32, %arg1: i32) -> (i32, i32) {
    %c0_i32 = arith.constant 0 : i32
    %c0_i32_0 = arith.constant 0 : i32
    %c0_i32_1 = arith.constant 0 : i32
    return %c0_i32, %c0_i32_0 : i32, i32
  }
  func.func @transform_7(%arg0: i32, %arg1: i32) -> (i32, i32) {
    %c0_i32 = arith.constant 0 : i32
    %c0_i32_0 = arith.constant 0 : i32
    %c0_i32_1 = arith.constant 0 : i32
    return %c0_i32, %c0_i32_0 : i32, i32
  }
  func.func @transform_8(%arg0: i32, %arg1: i32) -> (i32, i32, i32) {
    %c0_i32 = arith.constant 0 : i32
    %c0_i32_0 = arith.constant 0 : i32
    return %arg0, %c0_i32, %arg1 : i32, i32, i32
  }
}

</mosaic_0001>

<llo_original>
// kernel: tpu_custom_call.1
$region0: #{tpu_custom_call.1}
  #allocation0 [shape = 'u32[]', space=smem, size = 0x4, offset = 0x4, fixed_abs, tag = 'smem constant byte address 0x4 - core index']
  #allocation1 [shape = 'u32[144,128]{1,0:T(1,128)}', space=vmem, size = 0x12000, scoped, tag = 'internal scratch']
  %s0 = inlined_call_operand.vmem [shape: bf16[2,18,9,8], index: 0, kind: input, shape index: {}]
  %s1 = inlined_call_operand.vmem [shape: bf16[2,18,9,8], index: 1, kind: input, shape index: {}]
  %s2 = inlined_call_operand.vmem [shape: f32[2,4,64], index: 2, kind: input, shape index: {}]
  %s3 = inlined_call_operand.vmem [shape: bf16[6,8,4], index: 3, kind: input, shape index: {}]
  %s4 = inlined_call_operand.vmem [shape: f32[1,4], index: 4, kind: input, shape index: {}]
  %s5 = inlined_call_operand.vmem [shape: bf16[8,4], index: 5, kind: input, shape index: {}]
  %s6 = inlined_call_operand.vmem [shape: bf16[8,4], index: 6, kind: input, shape index: {}]
  %s7 = inlined_call_operand.vmem [shape: f32[8,1], index: 7, kind: input, shape index: {}]
  %s8 = inlined_call_operand.hbm [shape: f32[2,8,64], index: 8, kind: output, shape index: {}]
  %s9 = sld [smem:[#allocation0]]
  $region65: #{tpu_custom_call.1} parent=0
    _
  %s11 = ssub.s32 1, %s9
  %s12 = scalar_select 0, %s11, %s9
  $region1: #{tpu_custom_call.1} parent=0
    #allocation2 [shape = 'u8[8192]{0}', space=vmem, size = 0x2000, scoped, tag = 'output window, operand 0']
    #allocation3 [shape = 's32[2]{0}', space=sflag, size = 0x8, scoped, tag = 'scoped memory for tpu_custom_call.1']
    %13 = vsyncpa [#allocation3], 0
    %s14 = scalar_lea.sflag [#allocation3], 1
    %15 = vsyncpa %s14, 0
    loop: start=0, step=1, limit=4
    $region2: #{tpu_custom_call.1} parent=1 // loop_pre_header
      _
    $region3: #{tpu_custom_call.1} parent=1 // loop_header
      %s17 = sphi 0, %s21
      %p18 = scmp.ge.s32.totalorder %s17, 4
      %s24 = sphi 0, %s36
      %s25 = sphi 0, %s32
      %s26 = sphi 0, %s24
      %s27 = sphi 0, %s25
      %s28 = sphi 0, %s26
      %s29 = sphi 0, %s27
      %s41 = sphi 0, %s43
      %s44 = sphi 0, %s41
      %s45 = sphi 0, %s44
      %s61 = sphi 0, %s45
      %s73 = sphi 0, %s75
      %s76 = sphi 0, %s73
      %s77 = sphi 0, %s76
      %s93 = sphi 0, %s77
      %s101 = sphi 0, %s103
      %s104 = sphi 0, %s101
      %s105 = sphi 0, %s104
      %s121 = sphi 0, %s105
      %s125 = sphi 0, %s125
      %s127 = sphi 0, %s125
      %s128 = sphi 0, %s127
      %s142 = sphi 0, %s128
      %s146 = sphi 0, %s146
      %s148 = sphi 0, %s146
      %s149 = sphi 0, %s148
      %s163 = sphi 0, %s149
      %s167 = sphi 0, %s167
      %s169 = sphi 0, %s167
      %s170 = sphi 0, %s169
      %s184 = sphi 0, %s170
      %s188 = sphi 0, %s188
      %s190 = sphi 0, %s188
      %s191 = sphi 0, %s190
      %s205 = sphi 0, %s191
      %s209 = sphi 0, %s209
      %s211 = sphi 0, %s209
      %s212 = sphi 0, %s211
      %s226 = sphi 0, %s212
      %s234 = sphi 0, %s236
      %s237 = sphi 0, %s234
      %s238 = sphi 0, %s237
      %s254 = sphi 0, %s238
    $region4: #{tpu_custom_call.1} parent=1 // loop_header_branch
      %20 = sbr.rel (%p18) target = $region8
    $region5: #{tpu_custom_call.1} parent=1 // loop_body
      %s22 = ssub.s32 %s17, 1
      %s23 = ssub.s32 %s17, 2
      %s30 = sadd.s32 1, %s25
      %p31 = scmp.ge.s32.totalorder %s30, 1
      %s32 = scalar_select %p31, 0, %s30
      %s33 = sadd.s32 1, %s24
      %s34 = scalar_select %p31, %s33, %s24
      %p35 = scmp.ge.s32.totalorder %s34, 2
      %s36 = scalar_select %p35, 0, %s34
      %s37 = ssub.s32 %s24, %s36
      %s38 = ssub.s32 %s25, %s32
      %s39 = sor.u32 %s37, %s38
      %p40 = scmp.eq.s32.totalorder %s39, 0
      %s42 = sadd.s32 %s41, 1
      %s43 = scalar_select %p40, %s41, %s42
      %p46 = pneg %p40
      %p47 = scmp.eq.s32.totalorder %s17, 1
      %p48 = por %p46, %p47
      %p49 = scmp.ne.s32.totalorder %s41, %s44
      %p50 = scmp.eq.s32.totalorder %s17, 0
      %p51 = por %p49, %p50
      %p52 = scmp.ne.s32.totalorder %s41, %s44
      %p53 = scmp.eq.s32.totalorder %s22, 1
      %p54 = por %p52, %p53
      %p55 = scmp.ne.s32.totalorder %s44, %s45
      %p56 = scmp.eq.s32.totalorder %s22, 0
      %p57 = por %p55, %p56
      %p58 = scmp.ne.s32.totalorder %s44, %s45
      %p59 = scmp.eq.s32.totalorder %s23, 1
      %p60 = por %p58, %p59
      %p62 = scmp.ne.s32.totalorder %s45, %s61
      %p63 = scmp.eq.s32.totalorder %s23, 0
      %p64 = por %p62, %p63
      %s65 = sadd.s32 %s25, 1
      %s66 = smul.u32 %s65, 8
      %s67 = sadd.s32 %s32, 1
      %s68 = smul.u32 %s67, 8
      %s69 = ssub.s32 %s24, %s36
      %s70 = ssub.s32 %s66, %s68
      %s71 = sor.u32 %s69, %s70
      %p72 = scmp.eq.s32.totalorder %s71, 0
      %s74 = sadd.s32 %s73, 1
      %s75 = scalar_select %p72, %s73, %s74
      %p78 = pneg %p72
      %p79 = scmp.eq.s32.totalorder %s17, 1
      %p80 = por %p78, %p79
      %p81 = scmp.ne.s32.totalorder %s73, %s76
      %p82 = scmp.eq.s32.totalorder %s17, 0
      %p83 = por %p81, %p82
      %p84 = scmp.ne.s32.totalorder %s73, %s76
      %p85 = scmp.eq.s32.totalorder %s22, 1
      %p86 = por %p84, %p85
      %p87 = scmp.ne.s32.totalorder %s76, %s77
      %p88 = scmp.eq.s32.totalorder %s22, 0
      %p89 = por %p87, %p88
      %p90 = scmp.ne.s32.totalorder %s76, %s77
      %p91 = scmp.eq.s32.totalorder %s23, 1
      %p92 = por %p90, %p91
      %p94 = scmp.ne.s32.totalorder %s77, %s93
      %p95 = scmp.eq.s32.totalorder %s23, 0
      %p96 = por %p94, %p95
      %s97 = ssub.s32 %s24, %s36
      %s98 = ssub.s32 %s25, %s32
      %s99 = sor.u32 %s97, %s98
      %p100 = scmp.eq.s32.totalorder %s99, 0
      %s102 = sadd.s32 %s101, 1
      %s103 = scalar_select %p100, %s101, %s102
      %p106 = pneg %p100
      %p107 = scmp.eq.s32.totalorder %s17, 1
      %p108 = por %p106, %p107
      %p109 = scmp.ne.s32.totalorder %s101, %s104
      %p110 = scmp.eq.s32.totalorder %s17, 0
      %p111 = por %p109, %p110
      %p112 = scmp.ne.s32.totalorder %s101, %s104
      %p113 = scmp.eq.s32.totalorder %s22, 1
      %p114 = por %p112, %p113
      %p115 = scmp.ne.s32.totalorder %s104, %s105
      %p116 = scmp.eq.s32.totalorder %s22, 0
      %p117 = por %p115, %p116
      %p118 = scmp.ne.s32.totalorder %s104, %s105
      %p119 = scmp.eq.s32.totalorder %s23, 1
      %p120 = por %p118, %p119
      %p122 = scmp.ne.s32.totalorder %s105, %s121
      %p123 = scmp.eq.s32.totalorder %s23, 0
      %p124 = por %p122, %p123
      %s126 = sadd.s32 %s125, 1
      %p129 = scmp.eq.s32.totalorder %s17, 1
      %p130 = scmp.ne.s32.totalorder %s125, %s127
      %p131 = scmp.eq.s32.totalorder %s17, 0
      %p132 = por %p130, %p131
      %p133 = scmp.ne.s32.totalorder %s125, %s127
      %p134 = scmp.eq.s32.totalorder %s22, 1
      %p135 = por %p133, %p134
      %p136 = scmp.ne.s32.totalorder %s127, %s128
      %p137 = scmp.eq.s32.totalorder %s22, 0
      %p138 = por %p136, %p137
      %p139 = scmp.ne.s32.totalorder %s127, %s128
      %p140 = scmp.eq.s32.totalorder %s23, 1
      %p141 = por %p139, %p140
      %p143 = scmp.ne.s32.totalorder %s128, %s142
      %p144 = scmp.eq.s32.totalorder %s23, 0
      %p145 = por %p143, %p144
      %s147 = sadd.s32 %s146, 1
      %p150 = scmp.eq.s32.totalorder %s17, 1
      %p151 = scmp.ne.s32.totalorder %s146, %s148
      %p152 = scmp.eq.s32.totalorder %s17, 0
      %p153 = por %p151, %p152
      %p154 = scmp.ne.s32.totalorder %s146, %s148
      %p155 = scmp.eq.s32.totalorder %s22, 1
      %p156 = por %p154, %p155
      %p157 = scmp.ne.s32.totalorder %s148, %s149
      %p158 = scmp.eq.s32.totalorder %s22, 0
      %p159 = por %p157, %p158
      %p160 = scmp.ne.s32.totalorder %s148, %s149
      %p161 = scmp.eq.s32.totalorder %s23, 1
      %p162 = por %p160, %p161
      %p164 = scmp.ne.s32.totalorder %s149, %s163
      %p165 = scmp.eq.s32.totalorder %s23, 0
      %p166 = por %p164, %p165
      %s168 = sadd.s32 %s167, 1
      %p171 = scmp.eq.s32.totalorder %s17, 1
      %p172 = scmp.ne.s32.totalorder %s167, %s169
      %p173 = scmp.eq.s32.totalorder %s17, 0
      %p174 = por %p172, %p173
      %p175 = scmp.ne.s32.totalorder %s167, %s169
      %p176 = scmp.eq.s32.totalorder %s22, 1
      %p177 = por %p175, %p176
      %p178 = scmp.ne.s32.totalorder %s169, %s170
      %p179 = scmp.eq.s32.totalorder %s22, 0
      %p180 = por %p178, %p179
      %p181 = scmp.ne.s32.totalorder %s169, %s170
      %p182 = scmp.eq.s32.totalorder %s23, 1
      %p183 = por %p181, %p182
      %p185 = scmp.ne.s32.totalorder %s170, %s184
      %p186 = scmp.eq.s32.totalorder %s23, 0
      %p187 = por %p185, %p186
      %s189 = sadd.s32 %s188, 1
      %p192 = scmp.eq.s32.totalorder %s17, 1
      %p193 = scmp.ne.s32.totalorder %s188, %s190
      %p194 = scmp.eq.s32.totalorder %s17, 0
      %p195 = por %p193, %p194
      %p196 = scmp.ne.s32.totalorder %s188, %s190
      %p197 = scmp.eq.s32.totalorder %s22, 1
      %p198 = por %p196, %p197
      %p199 = scmp.ne.s32.totalorder %s190, %s191
      %p200 = scmp.eq.s32.totalorder %s22, 0
      %p201 = por %p199, %p200
      %p202 = scmp.ne.s32.totalorder %s190, %s191
      %p203 = scmp.eq.s32.totalorder %s23, 1
      %p204 = por %p202, %p203
      %p206 = scmp.ne.s32.totalorder %s191, %s205
      %p207 = scmp.eq.s32.totalorder %s23, 0
      %p208 = por %p206, %p207
      %s210 = sadd.s32 %s209, 1
      %p213 = scmp.eq.s32.totalorder %s17, 1
      %p214 = scmp.ne.s32.totalorder %s209, %s211
      %p215 = scmp.eq.s32.totalorder %s17, 0
      %p216 = por %p214, %p215
      %p217 = scmp.ne.s32.totalorder %s209, %s211
      %p218 = scmp.eq.s32.totalorder %s22, 1
      %p219 = por %p217, %p218
      %p220 = scmp.ne.s32.totalorder %s211, %s212
      %p221 = scmp.eq.s32.totalorder %s22, 0
      %p222 = por %p220, %p221
      %p223 = scmp.ne.s32.totalorder %s211, %s212
      %p224 = scmp.eq.s32.totalorder %s23, 1
      %p225 = por %p223, %p224
      %p227 = scmp.ne.s32.totalorder %s212, %s226
      %p228 = scmp.eq.s32.totalorder %s23, 0
      %p229 = por %p227, %p228
      %s230 = ssub.s32 %s24, %s36
      %s231 = ssub.s32 %s25, %s32
      %s232 = sor.u32 %s230, %s231
      %p233 = scmp.eq.s32.totalorder %s232, 0
      %s235 = sadd.s32 %s234, 1
      %s236 = scalar_select %p233, %s234, %s235
      %p239 = pneg %p233
      %p240 = scmp.eq.s32.totalorder %s17, 1
      %p241 = por %p239, %p240
      %p242 = scmp.ne.s32.totalorder %s234, %s237
      %p243 = scmp.eq.s32.totalorder %s17, 0
      %p244 = por %p242, %p243
      %p245 = scmp.ne.s32.totalorder %s234, %s237
      %p246 = scmp.eq.s32.totalorder %s22, 1
      %p247 = por %p245, %p246
      %p248 = scmp.ne.s32.totalorder %s237, %s238
      %p249 = scmp.eq.s32.totalorder %s22, 0
      %p250 = por %p248, %p249
      %p251 = scmp.ne.s32.totalorder %s237, %s238
      %p252 = scmp.eq.s32.totalorder %s23, 1
      %p253 = por %p251, %p252
      %p255 = scmp.ne.s32.totalorder %s238, %s254
      %p256 = scmp.eq.s32.totalorder %s23, 0
      %p257 = por %p255, %p256
      %p258 = scmp.le.s32.totalorder 1, %s17
      %p259 = scmp.lt.s32.totalorder %s17, 3
      %p260 = pnand %p258, %p259
      %p261 = pneg %p260
      // Predicated region
      $region9: #{tpu_custom_call.1} parent=5 // pred_check
        _
      $region10: #{tpu_custom_call.1} parent=5 // pred_check_branch
        %263 = sbr.rel (%p260) target = $region12
      $region11: #{tpu_custom_call.1} parent=5 // pred_region
        %s264 = ssub.s32 %s17, 1
        // Predicated region
        $region13: #{tpu_custom_call.1} parent=11 // pred_check
          %p265 = pneg %p138
        $region14: #{tpu_custom_call.1} parent=11 // pred_check_branch
          %267 = sbr.rel (%p265) target = $region16
        $region15: #{tpu_custom_call.1} parent=11 // pred_region
          _
        $region16: #{tpu_custom_call.1} parent=11 // pred_fallthru
          _
        // Predicated region
        $region17: #{tpu_custom_call.1} parent=11 // pred_check
          %p268 = pneg %p159
        $region18: #{tpu_custom_call.1} parent=11 // pred_check_branch
          %270 = sbr.rel (%p268) target = $region20
        $region19: #{tpu_custom_call.1} parent=11 // pred_region
          _
        $region20: #{tpu_custom_call.1} parent=11 // pred_fallthru
          _
        // Predicated region
        $region21: #{tpu_custom_call.1} parent=11 // pred_check
          %p271 = pneg %p180
        $region22: #{tpu_custom_call.1} parent=11 // pred_check_branch
          %273 = sbr.rel (%p271) target = $region24
        $region23: #{tpu_custom_call.1} parent=11 // pred_region
          _
        $region24: #{tpu_custom_call.1} parent=11 // pred_fallthru
          _
        // Predicated region
        $region25: #{tpu_custom_call.1} parent=11 // pred_check
          %p274 = pneg %p201
        $region26: #{tpu_custom_call.1} parent=11 // pred_check_branch
          %276 = sbr.rel (%p274) target = $region28
        $region27: #{tpu_custom_call.1} parent=11 // pred_region
          _
        $region28: #{tpu_custom_call.1} parent=11 // pred_fallthru
          _
        // Predicated region
        $region29: #{tpu_custom_call.1} parent=11 // pred_check
          %p277 = pneg %p222
        $region30: #{tpu_custom_call.1} parent=11 // pred_check_branch
          %279 = sbr.rel (%p277) target = $region32
        $region31: #{tpu_custom_call.1} parent=11 // pred_region
          _
        $region32: #{tpu_custom_call.1} parent=11 // pred_fallthru
          _
      $region12: #{tpu_custom_call.1} parent=5 // pred_fallthru
        _
      %p280 = scmp.lt.s32.totalorder %s17, 2
      // Predicated region
      $region33: #{tpu_custom_call.1} parent=5 // pred_check
        %p281 = pneg %p280
      $region34: #{tpu_custom_call.1} parent=5 // pred_check_branch
        %283 = sbr.rel (%p281) target = $region36
      $region35: #{tpu_custom_call.1} parent=5 // pred_region
        // Predicated region
        $region37: #{tpu_custom_call.1} parent=35 // pred_check
          %p284 = pneg %p51
        $region38: #{tpu_custom_call.1} parent=35 // pred_check_branch
          %286 = sbr.rel (%p284) target = $region40
        $region39: #{tpu_custom_call.1} parent=35 // pred_region
          %s287 = smul.u32 16, %s25
          %s288 = ssub.s32 18, %s287
          %p289 = scmp.lt.s32.totalorder %s288, 16
          %s290 = scalar_select %p289, %s288, 16
          %s291 = smul.u32 64, %s290
          %s292 = smul.u32 %s291, 2
          %p293 = scmp.lt.s32.totalorder %s24, 1
          %s294 = scalar_select %p293, %s24, 1
          %p295 = scmp.lt.s32.totalorder %s287, 17
          %s296 = scalar_select %p295, %s287, 17
          %s297 = smul.addr %s296, 2
          %s298 = smul.addr %s294, 36
          %s299 = sadd.s32 %s297, %s298
          %s300 = smul.addr %s299, 4
          %s301 = scalar_lea.vmem %s0, %s300
          %s302 = smul.u32 16, %s25
          %s303 = ssub.s32 18, %s302
          %p304 = scmp.lt.s32.totalorder %s303, 16
          %s305 = scalar_select %p304, %s303, 16
          %s306 = smul.u32 64, %s305
          %s307 = smul.u32 %s306, 2
        $region40: #{tpu_custom_call.1} parent=35 // pred_fallthru
          _
        // Predicated region
        $region41: #{tpu_custom_call.1} parent=35 // pred_check
          %p308 = pneg %p83
        $region42: #{tpu_custom_call.1} parent=35 // pred_check_branch
          %310 = sbr.rel (%p308) target = $region44
        $region43: #{tpu_custom_call.1} parent=35 // pred_region
          %s311 = sadd.s32 %s25, 1
          %s312 = smul.u32 %s311, 8
          %s313 = smul.u32 2, %s312
          %p314 = scmp.lt.s32.totalorder %s24, 1
          %s315 = scalar_select %p314, %s24, 1
          %p316 = scmp.lt.s32.totalorder %s313, 17
          %s317 = scalar_select %p316, %s313, 17
          %s318 = smul.addr %s317, 2
          %s319 = smul.addr %s315, 36
          %s320 = sadd.s32 %s318, %s319
          %s321 = smul.addr %s320, 4
          %s322 = scalar_lea.vmem %s1, %s321
          %s323 = sadd.s32 %s25, 1
          %s324 = smul.u32 %s323, 8
          %s325 = smul.u32 2, %s324
        $region44: #{tpu_custom_call.1} parent=35 // pred_fallthru
          _
        // Predicated region
        $region45: #{tpu_custom_call.1} parent=35 // pred_check
          %p326 = pneg %p111
        $region46: #{tpu_custom_call.1} parent=35 // pred_check_branch
          %328 = sbr.rel (%p326) target = $region48
        $region47: #{tpu_custom_call.1} parent=35 // pred_region
          %p329 = scmp.lt.s32.totalorder %s24, 1
          %s330 = scalar_select %p329, %s24, 1
          %p331 = scmp.lt.s32.totalorder %s25, 0
          %s332 = scalar_select %p331, %s25, 0
          %s333 = sadd.s32 %s332, %s330
          %s334 = smul.addr %s333, 4
          %s335 = scalar_lea.vmem %s2, %s334
        $region48: #{tpu_custom_call.1} parent=35 // pred_fallthru
          _
      $region36: #{tpu_custom_call.1} parent=5 // pred_fallthru
        _
      %p336 = scmp.le.s32.totalorder 1, %s17
      %p337 = scmp.lt.s32.totalorder %s17, 3
      %p338 = pnand %p336, %p337
      %p339 = pneg %p338
      // Predicated region
      $region49: #{tpu_custom_call.1} parent=5 // pred_check
        _
      $region50: #{tpu_custom_call.1} parent=5 // pred_check_branch
        %341 = sbr.rel (%p338) target = $region52
      $region51: #{tpu_custom_call.1} parent=5 // pred_region
        %s342 = ssub.s32 %s17, 1
        %s343 = smul.u32 16, %s27
        %s344 = ssub.s32 18, %s343
        %p345 = scmp.lt.s32.totalorder %s344, 16
        %s346 = scalar_select %p345, %s344, 16
        %s347 = smul.u32 64, %s346
        %s348 = smul.u32 %s347, 2
        %p349 = scmp.lt.s32.totalorder %s26, 1
        %s350 = scalar_select %p349, %s26, 1
        %p351 = scmp.lt.s32.totalorder %s343, 17
        %s352 = scalar_select %p351, %s343, 17
        %s353 = smul.addr %s352, 2
        %s354 = smul.addr %s350, 36
        %s355 = sadd.s32 %s353, %s354
        %s356 = smul.addr %s355, 4
        %s357 = scalar_lea.vmem %s0, %s356
        %p358 = pneg %p57
        %p359 = pneg %p54
        %s360 = sadd.s32 %s27, 1
        %s361 = smul.u32 %s360, 8
        %s362 = smul.u32 2, %s361
        %p363 = scmp.lt.s32.totalorder %s26, 1
        %s364 = scalar_select %p363, %s26, 1
        %p365 = scmp.lt.s32.totalorder %s362, 17
        %s366 = scalar_select %p365, %s362, 17
        %s367 = smul.addr %s366, 2
        %s368 = smul.addr %s364, 36
        %s369 = sadd.s32 %s367, %s368
        %s370 = smul.addr %s369, 4
        %s371 = scalar_lea.vmem %s1, %s370
        %p372 = pneg %p89
        %p373 = pneg %p86
        %p374 = scmp.lt.s32.totalorder %s26, 1
        %s375 = scalar_select %p374, %s26, 1
        %p376 = scmp.lt.s32.totalorder %s27, 0
        %s377 = scalar_select %p376, %s27, 0
        %s378 = sadd.s32 %s377, %s375
        %s379 = smul.addr %s378, 4
        %s380 = scalar_lea.vmem %s2, %s379
        %p381 = pneg %p117
        %p382 = pneg %p114
        %p383 = pneg %p138
        %p384 = pneg %p135
        %p385 = pneg %p159
        %p386 = pneg %p156
        %p387 = pneg %p180
        %p388 = pneg %p177
        %p389 = pneg %p201
        %p390 = pneg %p198
        %p391 = pneg %p222
        %p392 = pneg %p219
        %p393 = pneg %p250
        %p394 = pneg %p247
        %s395 = sand.u32 %s237, 1
        %s396 = scalar_lea.sflag [#allocation3], %s395
        %s397 = sand.u32 %s237, 1
        %s398 = smul.addr %s397, 8
        %s399 = scalar_lea.vmem [#allocation2], %s398
        %s400 = smul.u32 16, %s27
        %s401 = ssub.s32 18, %s400
        %p402 = scmp.lt.s32.totalorder %s401, 16
        %s403 = scalar_select %p402, %s401, 16
        %s404 = smul.u32 64, %s403
        %s405 = smul.u32 %s404, 2
        %p406 = scmp.lt.s32.totalorder %s26, 1
        %s407 = scalar_select %p406, %s26, 1
        %p408 = scmp.lt.s32.totalorder %s400, 17
        %s409 = scalar_select %p408, %s400, 17
        %s410 = smul.addr %s409, 2
        %s411 = smul.addr %s407, 36
        %s412 = sadd.s32 %s410, %s411
        %s413 = smul.addr %s412, 4
        %s414 = scalar_lea.vmem %s0, %s413
        %s415 = smul.u32 16, %s27
        %s416 = ssub.s32 18, %s415
        %p417 = scmp.lt.s32.totalorder %s416, 16
        %s418 = scalar_select %p417, %s416, 16
        %s419 = smul.u32 64, %s418
        %s420 = smul.u32 %s419, 2
        %s421 = sadd.s32 %s27, 1
        %s422 = smul.u32 %s421, 8
        %s423 = smul.u32 2, %s422
        %p424 = scmp.lt.s32.totalorder %s26, 1
        %s425 = scalar_select %p424, %s26, 1
        %p426 = scmp.lt.s32.totalorder %s423, 17
        %s427 = scalar_select %p426, %s423, 17
        %s428 = smul.addr %s427, 2
        %s429 = smul.addr %s425, 36
        %s430 = sadd.s32 %s428, %s429
        %s431 = smul.addr %s430, 4
        %s432 = scalar_lea.vmem %s1, %s431
        %s433 = sadd.s32 %s27, 1
        %s434 = smul.u32 %s433, 8
        %s435 = smul.u32 2, %s434
        %p436 = scmp.lt.s32.totalorder %s26, 1
        %s437 = scalar_select %p436, %s26, 1
        %p438 = scmp.lt.s32.totalorder %s27, 0
        %s439 = scalar_select %p438, %s27, 0
        %s440 = sadd.s32 %s439, %s437
        %s441 = smul.addr %s440, 4
        %s442 = scalar_lea.vmem %s2, %s441
        %v444 = vld [vmem:[%s414] sm:$0xf]
        %v445 = vld [vmem:[%s414 + $0x4] sm:$0x1]
        %v446 = vld [vmem:[%s414 + $0x8] sm:$0xf]
        %v447 = vld [vmem:[%s414 + $0xc] sm:$0x1]
        %v448 = vld [vmem:[%s414 + $0x10] sm:$0xf]
        %v449 = vld [vmem:[%s414 + $0x14] sm:$0x1]
        %v450 = vld [vmem:[%s414 + $0x18] sm:$0xf]
        %v451 = vld [vmem:[%s414 + $0x1c] sm:$0x1]
        %v452 = vld [vmem:[%s414 + $0x20] sm:$0xf]
        %v453 = vld [vmem:[%s414 + $0x24] sm:$0x1]
        %v454 = vld [vmem:[%s414 + $0x28] sm:$0xf]
        %v455 = vld [vmem:[%s414 + $0x2c] sm:$0x1]
        %v456 = vld [vmem:[%s414 + $0x30] sm:$0xf]
        %v457 = vld [vmem:[%s414 + $0x34] sm:$0x1]
        %v458 = vld [vmem:[%s414 + $0x38] sm:$0xf]
        %v459 = vld [vmem:[%s414 + $0x3c] sm:$0x1]
        %v460 = vld [vmem:[%s414 + $0x40] sm:$0xf]
        %v461 = vld [vmem:[%s414 + $0x44] sm:$0x1]
        %v462 = vld [vmem:[%s414 + $0x48] sm:$0xf]
        %v463 = vld [vmem:[%s414 + $0x4c] sm:$0x1]
        %v464 = vld [vmem:[%s414 + $0x50] sm:$0xf]
        %v465 = vld [vmem:[%s414 + $0x54] sm:$0x1]
        %v466 = vld [vmem:[%s414 + $0x58] sm:$0xf]
        %v467 = vld [vmem:[%s414 + $0x5c] sm:$0x1]
        %v468 = vld [vmem:[%s414 + $0x60] sm:$0xf]
        %v469 = vld [vmem:[%s414 + $0x64] sm:$0x1]
        %v470 = vld [vmem:[%s414 + $0x68] sm:$0xf]
        %v471 = vld [vmem:[%s414 + $0x6c] sm:$0x1]
        %v472 = vld [vmem:[%s414 + $0x70] sm:$0xf]
        %v473 = vld [vmem:[%s414 + $0x74] sm:$0x1]
        %v474 = vld [vmem:[%s414 + $0x78] sm:$0xf]
        %v475 = vld [vmem:[%s414 + $0x7c] sm:$0x1]
        %v476 = vld [vmem:[%s432] sm:$0xf]
        %v477 = vld [vmem:[%s432 + $0x4] sm:$0x1]
        %vm478 = vsmask.f32 3328
        %vm479 = vsmask.f32 7440
        %vm480 = vmor %vm478, %vm479
        %v482 = vshrl.u32 %v444, 16
        %v484 = vrot.slane %v482, 4
        %v485 = vshll.u32 %v444, 16
        %v487 = vrot.slane %v485, 5
        %v488 = vor.u32 %v484, %v487
        %v489 = vrot.slane %v488, 4
        %v491 = vshll.u32 %v445, 16
        %v493 = vrot.slane %v491, 5
        %v494 = vsel %vm480, %v489, %v493
        %v496 = vshrl.u32 %v448, 16
        %v498 = vrot.slane %v496, 4
        %v499 = vshll.u32 %v448, 16
        %v501 = vrot.slane %v499, 5
        %v502 = vor.u32 %v498, %v501
        %v503 = vrot.slane %v502, 4
        %v505 = vshll.u32 %v449, 16
        %v507 = vrot.slane %v505, 5
        %v508 = vsel %vm480, %v503, %v507
        %v510 = vshrl.u32 %v452, 16
        %v512 = vrot.slane %v510, 4
        %v513 = vshll.u32 %v452, 16
        %v515 = vrot.slane %v513, 5
        %v516 = vor.u32 %v512, %v515
        %v517 = vrot.slane %v516, 4
        %v519 = vshll.u32 %v453, 16
        %v521 = vrot.slane %v519, 5
        %v522 = vsel %vm480, %v517, %v521
        %v524 = vshrl.u32 %v456, 16
        %v526 = vrot.slane %v524, 4
        %v527 = vshll.u32 %v456, 16
        %v529 = vrot.slane %v527, 5
        %v530 = vor.u32 %v526, %v529
        %v531 = vrot.slane %v530, 4
        %v533 = vshll.u32 %v457, 16
        %v535 = vrot.slane %v533, 5
        %v536 = vsel %vm480, %v531, %v535
        %v538 = vshrl.u32 %v460, 16
        %v540 = vrot.slane %v538, 4
        %v541 = vshll.u32 %v460, 16
        %v543 = vrot.slane %v541, 5
        %v544 = vor.u32 %v540, %v543
        %v545 = vrot.slane %v544, 4
        %v547 = vshll.u32 %v461, 16
        %v549 = vrot.slane %v547, 5
        %v550 = vsel %vm480, %v545, %v549
        %v552 = vshrl.u32 %v464, 16
        %v554 = vrot.slane %v552, 4
        %v555 = vshll.u32 %v464, 16
        %v557 = vrot.slane %v555, 5
        %v558 = vor.u32 %v554, %v557
        %v559 = vrot.slane %v558, 4
        %v561 = vshll.u32 %v465, 16
        %v563 = vrot.slane %v561, 5
        %v564 = vsel %vm480, %v559, %v563
        %v566 = vshrl.u32 %v468, 16
        %v568 = vrot.slane %v566, 4
        %v569 = vshll.u32 %v468, 16
        %v571 = vrot.slane %v569, 5
        %v572 = vor.u32 %v568, %v571
        %v573 = vrot.slane %v572, 4
        %v575 = vshll.u32 %v469, 16
        %v577 = vrot.slane %v575, 5
        %v578 = vsel %vm480, %v573, %v577
        %v580 = vshrl.u32 %v472, 16
        %v582 = vrot.slane %v580, 4
        %v583 = vshll.u32 %v472, 16
        %v585 = vrot.slane %v583, 5
        %v586 = vor.u32 %v582, %v585
        %v587 = vrot.slane %v586, 4
        %v589 = vshll.u32 %v473, 16
        %v591 = vrot.slane %v589, 5
        %v592 = vsel %vm480, %v587, %v591
        %v593 = vld [vmem:[%s3] sm:$0xf]
        %s594 = scalar_lea.vmem %s3, 4
        %v595 = vld [vmem:[%s594] sm:$0xf]
        %v596 = vunpack.c.l.b16 %v494
        %v597 = vunpack.c.l.b16 %v508
        %v598 = vunpack.c.l.b16 %v522
        %v599 = vunpack.c.l.b16 %v536
        %v600 = vunpack.c.l.b16 %v550
        %v601 = vunpack.c.l.b16 %v564
        %v602 = vunpack.c.l.b16 %v578
        %v603 = vunpack.c.l.b16 %v592
        %v604 = vpack.c.b16 %v597, %v596
        %v605 = vpack.c.b16 %v599, %v598
        %v606 = vpack.c.b16 %v601, %v600
        %v607 = vpack.c.b16 %v603, %v602
        %vm608 = vcmask 64512
        %v610 = vsel %vm608, %v604, 0
        %v613 = vsel %vm608, %v605, 0
        %v616 = vsel %vm608, %v606, 0
        %v619 = vsel %vm608, %v607, 0
        %vm621 = vcmask 1043456
        %v623 = vsel %vm621, %v595, 0
        %625 = vmatprep.subr.bf16.mxu0 0
        %626 = vmatpush1.bf16.msra.mxu0 %v623
        %627 = vmatprep.subr.bf16.mxu0 0
        %628 = vmatpush1.bf16.msra.mxu0 0
        %629 = vmatprep.subr.bf16.mxu0 0
        %630 = vmatpush1.bf16.msra.mxu0 0
        %631 = vmatprep.subr.bf16.mxu0 0
        %632 = vmatpush1.bf16.msra.mxu0 0
        %633 = vmatprep.subr.bf16.mxu0 0
        %634 = vmatpush1.bf16.msra.mxu0 0
        %635 = vmatprep.subr.bf16.mxu0 0
        %636 = vmatpush1.bf16.msra.mxu0 0
        %637 = vmatprep.subr.bf16.mxu0 0
        %638 = vmatpush1.bf16.msra.mxu0 0
        %639 = vmatprep.subr.bf16.mxu0 0
        %640 = vmatpush1.bf16.msra.mxu0 0
        %641 = vmatprep.subr.bf16.mxu0 0
        %642 = vmatpush1.bf16.msra.mxu0 0
        %643 = vmatprep.subr.bf16.mxu0 0
        %644 = vmatpush1.bf16.msra.mxu0 0
        %645 = vmatprep.subr.bf16.mxu0 0
        %646 = vmatpush1.bf16.msra.mxu0 0
        %647 = vmatprep.subr.bf16.mxu0 0
        %648 = vmatpush1.bf16.msra.mxu0 0
        %649 = vmatprep.subr.bf16.mxu0 0
        %650 = vmatpush1.bf16.msra.mxu0 0
        %651 = vmatprep.subr.bf16.mxu0 0
        %652 = vmatpush1.bf16.msra.mxu0 0
        %653 = vmatprep.subr.bf16.mxu0 0
        %654 = vmatpush1.bf16.msra.mxu0 0
        %655 = vmatprep.subr.bf16.mxu0 0
        %656 = vmatpush1.bf16.msra.mxu0 0
        %657 = vmatprep.mubr.bf16.mxu0 0
        %658 = vmatmul.mubr.bf16.gmra.mrb[0].mxu0 %v610
        %v659 = vpop.f32.mrb[0].mxu0
        %v660 = vadd.f32 0.0, %v659
        %v661 = vpop.f32.mrb[0].mxu0
        %v662 = vpop.f32.mrb[0].mxu0
        %v663 = vadd.f32 0.0, %v662
        %v664 = vpop.f32.mrb[0].mxu0
        %665 = vmatprep.mubr.bf16.mxu0 0
        %666 = vmatmul.mubr.bf16.gmra.mrb[0].mxu0 %v613
        %v667 = vpop.f32.mrb[0].mxu0
        %v668 = vadd.f32 0.0, %v667
        %v669 = vpop.f32.mrb[0].mxu0
        %v670 = vpop.f32.mrb[0].mxu0
        %v671 = vadd.f32 0.0, %v670
        %v672 = vpop.f32.mrb[0].mxu0
        %673 = vmatprep.mubr.bf16.mxu0 0
        %674 = vmatmul.mubr.bf16.gmra.mrb[0].mxu0 %v616
        %v675 = vpop.f32.mrb[0].mxu0
        %v676 = vadd.f32 0.0, %v675
        %v677 = vpop.f32.mrb[0].mxu0
        %v678 = vpop.f32.mrb[0].mxu0
        %v679 = vadd.f32 0.0, %v678
        %v680 = vpop.f32.mrb[0].mxu0
        %681 = vmatprep.mubr.bf16.mxu0 0
        %682 = vmatmul.mubr.bf16.gmra.mrb[0].mxu0 %v619
        %v683 = vpop.f32.mrb[0].mxu0
        %v684 = vadd.f32 0.0, %v683
        %v685 = vpop.f32.mrb[0].mxu0
        %v686 = vpop.f32.mrb[0].mxu0
        %v687 = vadd.f32 0.0, %v686
        %v688 = vpop.f32.mrb[0].mxu0
        %689 = vdwg.mxu0
        %v698 = vunpack.c.l.b16 %v444
        %v699 = vunpack.c.l.b16 %v448
        %v700 = vunpack.c.l.b16 %v452
        %v701 = vunpack.c.l.b16 %v456
        %v702 = vunpack.c.l.b16 %v460
        %v703 = vunpack.c.l.b16 %v464
        %v704 = vunpack.c.l.b16 %v468
        %v705 = vunpack.c.l.b16 %v472
        %v706 = vpack.c.b16 %v699, %v698
        %v707 = vpack.c.b16 %v701, %v700
        %v708 = vpack.c.b16 %v703, %v702
        %v709 = vpack.c.b16 %v705, %v704
        %v711 = vsel %vm608, %v706, 0
        %v714 = vsel %vm608, %v707, 0
        %v717 = vsel %vm608, %v708, 0
        %v720 = vsel %vm608, %v709, 0
        %v723 = vsel %vm621, %v593, 0
        %725 = vmatprep.subr.bf16.mxu0 0
        %726 = vmatpush1.bf16.msra.mxu0 %v723
        %727 = vmatprep.subr.bf16.mxu0 0
        %728 = vmatpush1.bf16.msra.mxu0 0
        %729 = vmatprep.subr.bf16.mxu0 0
        %730 = vmatpush1.bf16.msra.mxu0 0
        %731 = vmatprep.subr.bf16.mxu0 0
        %732 = vmatpush1.bf16.msra.mxu0 0
        %733 = vmatprep.subr.bf16.mxu0 0
        %734 = vmatpush1.bf16.msra.mxu0 0
        %735 = vmatprep.subr.bf16.mxu0 0
        %736 = vmatpush1.bf16.msra.mxu0 0
        %737 = vmatprep.subr.bf16.mxu0 0
        %738 = vmatpush1.bf16.msra.mxu0 0
        %739 = vmatprep.subr.bf16.mxu0 0
        %740 = vmatpush1.bf16.msra.mxu0 0
        %741 = vmatprep.subr.bf16.mxu0 0
        %742 = vmatpush1.bf16.msra.mxu0 0
        %743 = vmatprep.subr.bf16.mxu0 0
        %744 = vmatpush1.bf16.msra.mxu0 0
        %745 = vmatprep.subr.bf16.mxu0 0
        %746 = vmatpush1.bf16.msra.mxu0 0
        %747 = vmatprep.subr.bf16.mxu0 0
        %748 = vmatpush1.bf16.msra.mxu0 0
        %749 = vmatprep.subr.bf16.mxu0 0
        %750 = vmatpush1.bf16.msra.mxu0 0
        %751 = vmatprep.subr.bf16.mxu0 0
        %752 = vmatpush1.bf16.msra.mxu0 0
        %753 = vmatprep.subr.bf16.mxu0 0
        %754 = vmatpush1.bf16.msra.mxu0 0
        %755 = vmatprep.subr.bf16.mxu0 0
        %756 = vmatpush1.bf16.msra.mxu0 0
        %757 = vmatprep.mubr.bf16.mxu0 0
        %758 = vmatmul.mubr.bf16.gmra.mrb[0].mxu0 %v711
        %v759 = vpop.f32.mrb[0].mxu0
        %v760 = vadd.f32 %v660, %v759
        %v761 = vpop.f32.mrb[0].mxu0
        %v762 = vpop.f32.mrb[0].mxu0
        %v763 = vadd.f32 %v663, %v762
        %v764 = vpop.f32.mrb[0].mxu0
        %765 = vmatprep.mubr.bf16.mxu0 0
        %766 = vmatmul.mubr.bf16.gmra.mrb[0].mxu0 %v714
        %v767 = vpop.f32.mrb[0].mxu0
        %v768 = vadd.f32 %v668, %v767
        %v769 = vpop.f32.mrb[0].mxu0
        %v770 = vpop.f32.mrb[0].mxu0
        %v771 = vadd.f32 %v671, %v770
        %v772 = vpop.f32.mrb[0].mxu0
        %773 = vmatprep.mubr.bf16.mxu0 0
        %774 = vmatmul.mubr.bf16.gmra.mrb[0].mxu0 %v717
        %v775 = vpop.f32.mrb[0].mxu0
        %v776 = vadd.f32 %v676, %v775
        %v777 = vpop.f32.mrb[0].mxu0
        %v778 = vpop.f32.mrb[0].mxu0
        %v779 = vadd.f32 %v679, %v778
        %v780 = vpop.f32.mrb[0].mxu0
        %781 = vmatprep.mubr.bf16.mxu0 0
        %782 = vmatmul.mubr.bf16.gmra.mrb[0].mxu0 %v720
        %v783 = vpop.f32.mrb[0].mxu0
        %v784 = vadd.f32 %v684, %v783
        %v785 = vpop.f32.mrb[0].mxu0
        %v786 = vpop.f32.mrb[0].mxu0
        %v787 = vadd.f32 %v687, %v786
        %v788 = vpop.f32.mrb[0].mxu0
        %789 = vdwg.mxu0
        %v791 = vshrl.u32 %v446, 16
        %v793 = vrot.slane %v791, 4
        %v794 = vshll.u32 %v446, 16
        %v796 = vrot.slane %v794, 5
        %v797 = vor.u32 %v793, %v796
        %v798 = vrot.slane %v797, 4
        %v800 = vshll.u32 %v447, 16
        %v802 = vrot.slane %v800, 5
        %v803 = vsel %vm480, %v798, %v802
        %v805 = vshrl.u32 %v450, 16
        %v807 = vrot.slane %v805, 4
        %v808 = vshll.u32 %v450, 16
        %v810 = vrot.slane %v808, 5
        %v811 = vor.u32 %v807, %v810
        %v812 = vrot.slane %v811, 4
        %v814 = vshll.u32 %v451, 16
        %v816 = vrot.slane %v814, 5
        %v817 = vsel %vm480, %v812, %v816
        %v819 = vshrl.u32 %v454, 16
        %v821 = vrot.slane %v819, 4
        %v822 = vshll.u32 %v454, 16
        %v824 = vrot.slane %v822, 5
        %v825 = vor.u32 %v821, %v824
        %v826 = vrot.slane %v825, 4
        %v828 = vshll.u32 %v455, 16
        %v830 = vrot.slane %v828, 5
        %v831 = vsel %vm480, %v826, %v830
        %v833 = vshrl.u32 %v458, 16
        %v835 = vrot.slane %v833, 4
        %v836 = vshll.u32 %v458, 16
        %v838 = vrot.slane %v836, 5
        %v839 = vor.u32 %v835, %v838
        %v840 = vrot.slane %v839, 4
        %v842 = vshll.u32 %v459, 16
        %v844 = vrot.slane %v842, 5
        %v845 = vsel %vm480, %v840, %v844
        %v847 = vshrl.u32 %v462, 16
        %v849 = vrot.slane %v847, 4
        %v850 = vshll.u32 %v462, 16
        %v852 = vrot.slane %v850, 5
        %v853 = vor.u32 %v849, %v852
        %v854 = vrot.slane %v853, 4
        %v856 = vshll.u32 %v463, 16
        %v858 = vrot.slane %v856, 5
        %v859 = vsel %vm480, %v854, %v858
        %v861 = vshrl.u32 %v466, 16
        %v863 = vrot.slane %v861, 4
        %v864 = vshll.u32 %v466, 16
        %v866 = vrot.slane %v864, 5
        %v867 = vor.u32 %v863, %v866
        %v868 = vrot.slane %v867, 4
        %v870 = vshll.u32 %v467, 16
        %v872 = vrot.slane %v870, 5
        %v873 = vsel %vm480, %v868, %v872
        %v875 = vshrl.u32 %v470, 16
        %v877 = vrot.slane %v875, 4
        %v878 = vshll.u32 %v470, 16
        %v880 = vrot.slane %v878, 5
        %v881 = vor.u32 %v877, %v880
        %v882 = vrot.slane %v881, 4
        %v884 = vshll.u32 %v471, 16
        %v886 = vrot.slane %v884, 5
        %v887 = vsel %vm480, %v882, %v886
        %v889 = vshrl.u32 %v474, 16
        %v891 = vrot.slane %v889, 4
        %v892 = vshll.u32 %v474, 16
        %v894 = vrot.slane %v892, 5
        %v895 = vor.u32 %v891, %v894
        %v896 = vrot.slane %v895, 4
        %v898 = vshll.u32 %v475, 16
        %v900 = vrot.slane %v898, 5
        %v901 = vsel %vm480, %v896, %v900
        %s902 = scalar_lea.vmem %s3, 8
        %v903 = vld [vmem:[%s902] sm:$0xf]
        %s904 = scalar_lea.vmem %s3, 12
        %v905 = vld [vmem:[%s904] sm:$0xf]
        %v906 = vunpack.c.l.b16 %v803
        %v907 = vunpack.c.l.b16 %v817
        %v908 = vunpack.c.l.b16 %v831
        %v909 = vunpack.c.l.b16 %v845
        %v910 = vunpack.c.l.b16 %v859
        %v911 = vunpack.c.l.b16 %v873
        %v912 = vunpack.c.l.b16 %v887
        %v913 = vunpack.c.l.b16 %v901
        %v914 = vpack.c.b16 %v907, %v906
        %v915 = vpack.c.b16 %v909, %v908
        %v916 = vpack.c.b16 %v911, %v910
        %v917 = vpack.c.b16 %v913, %v912
        %v919 = vsel %vm608, %v914, 0
        %v922 = vsel %vm608, %v915, 0
        %v925 = vsel %vm608, %v916, 0
        %v928 = vsel %vm608, %v917, 0
        %v931 = vsel %vm621, %v905, 0
        %933 = vmatprep.subr.bf16.mxu0 0
        %934 = vmatpush1.bf16.msra.mxu0 %v931
        %935 = vmatprep.subr.bf16.mxu0 0
        %936 = vmatpush1.bf16.msra.mxu0 0
        %937 = vmatprep.subr.bf16.mxu0 0
        %938 = vmatpush1.bf16.msra.mxu0 0
        %939 = vmatprep.subr.bf16.mxu0 0
        %940 = vmatpush1.bf16.msra.mxu0 0
        %941 = vmatprep.subr.bf16.mxu0 0
        %942 = vmatpush1.bf16.msra.mxu0 0
        %943 = vmatprep.subr.bf16.mxu0 0
        %944 = vmatpush1.bf16.msra.mxu0 0
        %945 = vmatprep.subr.bf16.mxu0 0
        %946 = vmatpush1.bf16.msra.mxu0 0
        %947 = vmatprep.subr.bf16.mxu0 0
        %948 = vmatpush1.bf16.msra.mxu0 0
        %949 = vmatprep.subr.bf16.mxu0 0
        %950 = vmatpush1.bf16.msra.mxu0 0
        %951 = vmatprep.subr.bf16.mxu0 0
        %952 = vmatpush1.bf16.msra.mxu0 0
        %953 = vmatprep.subr.bf16.mxu0 0
        %954 = vmatpush1.bf16.msra.mxu0 0
        %955 = vmatprep.subr.bf16.mxu0 0
        %956 = vmatpush1.bf16.msra.mxu0 0
        %957 = vmatprep.subr.bf16.mxu0 0
        %958 = vmatpush1.bf16.msra.mxu0 0
        %959 = vmatprep.subr.bf16.mxu0 0
        %960 = vmatpush1.bf16.msra.mxu0 0
        %961 = vmatprep.subr.bf16.mxu0 0
        %962 = vmatpush1.bf16.msra.mxu0 0
        %963 = vmatprep.subr.bf16.mxu0 0
        %964 = vmatpush1.bf16.msra.mxu0 0
        %965 = vmatprep.mubr.bf16.mxu0 0
        %966 = vmatmul.mubr.bf16.gmra.mrb[0].mxu0 %v919
        %v967 = vpop.f32.mrb[0].mxu0
        %v968 = vadd.f32 0.0, %v967
        %v969 = vpop.f32.mrb[0].mxu0
        %v970 = vpop.f32.mrb[0].mxu0
        %v971 = vadd.f32 0.0, %v970
        %v972 = vpop.f32.mrb[0].mxu0
        %973 = vmatprep.mubr.bf16.mxu0 0
        %974 = vmatmul.mubr.bf16.gmra.mrb[0].mxu0 %v922
        %v975 = vpop.f32.mrb[0].mxu0
        %v976 = vadd.f32 0.0, %v975
        %v977 = vpop.f32.mrb[0].mxu0
        %v978 = vpop.f32.mrb[0].mxu0
        %v979 = vadd.f32 0.0, %v978
        %v980 = vpop.f32.mrb[0].mxu0
        %981 = vmatprep.mubr.bf16.mxu0 0
        %982 = vmatmul.mubr.bf16.gmra.mrb[0].mxu0 %v925
        %v983 = vpop.f32.mrb[0].mxu0
        %v984 = vadd.f32 0.0, %v983
        %v985 = vpop.f32.mrb[0].mxu0
        %v986 = vpop.f32.mrb[0].mxu0
        %v987 = vadd.f32 0.0, %v986
        %v988 = vpop.f32.mrb[0].mxu0
        %989 = vmatprep.mubr.bf16.mxu0 0
        %990 = vmatmul.mubr.bf16.gmra.mrb[0].mxu0 %v928
        %v991 = vpop.f32.mrb[0].mxu0
        %v992 = vadd.f32 0.0, %v991
        %v993 = vpop.f32.mrb[0].mxu0
        %v994 = vpop.f32.mrb[0].mxu0
        %v995 = vadd.f32 0.0, %v994
        %v996 = vpop.f32.mrb[0].mxu0
        %997 = vdwg.mxu0
        %v1006 = vunpack.c.l.b16 %v446
        %v1007 = vunpack.c.l.b16 %v450
        %v1008 = vunpack.c.l.b16 %v454
        %v1009 = vunpack.c.l.b16 %v458
        %v1010 = vunpack.c.l.b16 %v462
        %v1011 = vunpack.c.l.b16 %v466
        %v1012 = vunpack.c.l.b16 %v470
        %v1013 = vunpack.c.l.b16 %v474
        %v1014 = vpack.c.b16 %v1007, %v1006
        %v1015 = vpack.c.b16 %v1009, %v1008
        %v1016 = vpack.c.b16 %v1011, %v1010
        %v1017 = vpack.c.b16 %v1013, %v1012
        %v1019 = vsel %vm608, %v1014, 0
        %v1022 = vsel %vm608, %v1015, 0
        %v1025 = vsel %vm608, %v1016, 0
        %v1028 = vsel %vm608, %v1017, 0
        %v1031 = vsel %vm621, %v903, 0
        %1033 = vmatprep.subr.bf16.mxu0 0
        %1034 = vmatpush1.bf16.msra.mxu0 %v1031
        %1035 = vmatprep.subr.bf16.mxu0 0
        %1036 = vmatpush1.bf16.msra.mxu0 0
        %1037 = vmatprep.subr.bf16.mxu0 0
        %1038 = vmatpush1.bf16.msra.mxu0 0
        %1039 = vmatprep.subr.bf16.mxu0 0
        %1040 = vmatpush1.bf16.msra.mxu0 0
        %1041 = vmatprep.subr.bf16.mxu0 0
        %1042 = vmatpush1.bf16.msra.mxu0 0
        %1043 = vmatprep.subr.bf16.mxu0 0
        %1044 = vmatpush1.bf16.msra.mxu0 0
        %1045 = vmatprep.subr.bf16.mxu0 0
        %1046 = vmatpush1.bf16.msra.mxu0 0
        %1047 = vmatprep.subr.bf16.mxu0 0
        %1048 = vmatpush1.bf16.msra.mxu0 0
        %1049 = vmatprep.subr.bf16.mxu0 0
        %1050 = vmatpush1.bf16.msra.mxu0 0
        %1051 = vmatprep.subr.bf16.mxu0 0
        %1052 = vmatpush1.bf16.msra.mxu0 0
        %1053 = vmatprep.subr.bf16.mxu0 0
        %1054 = vmatpush1.bf16.msra.mxu0 0
        %1055 = vmatprep.subr.bf16.mxu0 0
        %1056 = vmatpush1.bf16.msra.mxu0 0
        %1057 = vmatprep.subr.bf16.mxu0 0
        %1058 = vmatpush1.bf16.msra.mxu0 0
        %1059 = vmatprep.subr.bf16.mxu0 0
        %1060 = vmatpush1.bf16.msra.mxu0 0
        %1061 = vmatprep.subr.bf16.mxu0 0
        %1062 = vmatpush1.bf16.msra.mxu0 0
        %1063 = vmatprep.subr.bf16.mxu0 0
        %1064 = vmatpush1.bf16.msra.mxu0 0
        %1065 = vmatprep.mubr.bf16.mxu0 0
        %1066 = vmatmul.mubr.bf16.gmra.mrb[0].mxu0 %v1019
        %v1067 = vpop.f32.mrb[0].mxu0
        %v1068 = vadd.f32 %v968, %v1067
        %v1069 = vpop.f32.mrb[0].mxu0
        %v1070 = vpop.f32.mrb[0].mxu0
        %v1071 = vadd.f32 %v971, %v1070
        %v1072 = vpop.f32.mrb[0].mxu0
        %1073 = vmatprep.mubr.bf16.mxu0 0
        %1074 = vmatmul.mubr.bf16.gmra.mrb[0].mxu0 %v1022
        %v1075 = vpop.f32.mrb[0].mxu0
        %v1076 = vadd.f32 %v976, %v1075
        %v1077 = vpop.f32.mrb[0].mxu0
        %v1078 = vpop.f32.mrb[0].mxu0
        %v1079 = vadd.f32 %v979, %v1078
        %v1080 = vpop.f32.mrb[0].mxu0
        %1081 = vmatprep.mubr.bf16.mxu0 0
        %1082 = vmatmul.mubr.bf16.gmra.mrb[0].mxu0 %v1025
        %v1083 = vpop.f32.mrb[0].mxu0
        %v1084 = vadd.f32 %v984, %v1083
        %v1085 = vpop.f32.mrb[0].mxu0
        %v1086 = vpop.f32.mrb[0].mxu0
        %v1087 = vadd.f32 %v987, %v1086
        %v1088 = vpop.f32.mrb[0].mxu0
        %1089 = vmatprep.mubr.bf16.mxu0 0
        %1090 = vmatmul.mubr.bf16.gmra.mrb[0].mxu0 %v1028
        %v1091 = vpop.f32.mrb[0].mxu0
        %v1092 = vadd.f32 %v992, %v1091
        %v1093 = vpop.f32.mrb[0].mxu0
        %v1094 = vpop.f32.mrb[0].mxu0
        %v1095 = vadd.f32 %v995, %v1094
        %v1096 = vpop.f32.mrb[0].mxu0
        %1097 = vdwg.mxu0
        %v1098 = vadd.f32 %v760, %v1068
        %v1099 = vadd.f32 %v763, %v1071
        %v1100 = vadd.f32 %v768, %v1076
        %v1101 = vadd.f32 %v771, %v1079
        %v1102 = vadd.f32 %v776, %v1084
        %v1103 = vadd.f32 %v779, %v1087
        %v1104 = vadd.f32 %v784, %v1092
        %v1105 = vadd.f32 %v787, %v1095
        %v1107 = vshrl.u32 %v476, 16
        %v1109 = vrot.slane %v1107, 4
        %v1110 = vshll.u32 %v476, 16
        %v1112 = vrot.slane %v1110, 5
        %v1113 = vor.u32 %v1109, %v1112
        %v1114 = vrot.slane %v1113, 4
        %v1116 = vshll.u32 %v477, 16
        %v1118 = vrot.slane %v1116, 5
        %v1119 = vsel %vm480, %v1114, %v1118
        %s1120 = scalar_lea.vmem %s3, 16
        %v1121 = vld [vmem:[%s1120] sm:$0xf]
        %s1122 = scalar_lea.vmem %s3, 20
        %v1123 = vld [vmem:[%s1122] sm:$0xf]
        %v1124 = vunpack.c.l.b16 %v1119
        %v1125 = vpack.c.b16 %v598, %v597
        %v1126 = vpack.c.b16 %v600, %v599
        %v1127 = vpack.c.b16 %v602, %v601
        %v1128 = vpack.c.b16 %v1124, %v603
        %v1130 = vsel %vm608, %v1125, 0
        %v1133 = vsel %vm608, %v1126, 0
        %v1136 = vsel %vm608, %v1127, 0
        %v1139 = vsel %vm608, %v1128, 0
        %v1142 = vsel %vm621, %v1123, 0
        %1144 = vmatprep.subr.bf16.mxu0 0
        %1145 = vmatpush1.bf16.msra.mxu0 %v1142
        %1146 = vmatprep.subr.bf16.mxu0 0
        %1147 = vmatpush1.bf16.msra.mxu0 0
        %1148 = vmatprep.subr.bf16.mxu0 0
        %1149 = vmatpush1.bf16.msra.mxu0 0
        %1150 = vmatprep.subr.bf16.mxu0 0
        %1151 = vmatpush1.bf16.msra.mxu0 0
        %1152 = vmatprep.subr.bf16.mxu0 0
        %1153 = vmatpush1.bf16.msra.mxu0 0
        %1154 = vmatprep.subr.bf16.mxu0 0
        %1155 = vmatpush1.bf16.msra.mxu0 0
        %1156 = vmatprep.subr.bf16.mxu0 0
        %1157 = vmatpush1.bf16.msra.mxu0 0
        %1158 = vmatprep.subr.bf16.mxu0 0
        %1159 = vmatpush1.bf16.msra.mxu0 0
        %1160 = vmatprep.subr.bf16.mxu0 0
        %1161 = vmatpush1.bf16.msra.mxu0 0
        %1162 = vmatprep.subr.bf16.mxu0 0
        %1163 = vmatpush1.bf16.msra.mxu0 0
        %1164 = vmatprep.subr.bf16.mxu0 0
        %1165 = vmatpush1.bf16.msra.mxu0 0
        %1166 = vmatprep.subr.bf16.mxu0 0
        %1167 = vmatpush1.bf16.msra.mxu0 0
        %1168 = vmatprep.subr.bf16.mxu0 0
        %1169 = vmatpush1.bf16.msra.mxu0 0
        %1170 = vmatprep.subr.bf16.mxu0 0
        %1171 = vmatpush1.bf16.msra.mxu0 0
        %1172 = vmatprep.subr.bf16.mxu0 0
        %1173 = vmatpush1.bf16.msra.mxu0 0
        %1174 = vmatprep.subr.bf16.mxu0 0
        %1175 = vmatpush1.bf16.msra.mxu0 0
        %1176 = vmatprep.mubr.bf16.mxu0 0
        %1177 = vmatmul.mubr.bf16.gmra.mrb[0].mxu0 %v1130
        %v1178 = vpop.f32.mrb[0].mxu0
        %v1179 = vadd.f32 0.0, %v1178
        %v1180 = vpop.f32.mrb[0].mxu0
        %v1181 = vpop.f32.mrb[0].mxu0
        %v1182 = vadd.f32 0.0, %v1181
        %v1183 = vpop.f32.mrb[0].mxu0
        %1184 = vmatprep.mubr.bf16.mxu0 0
        %1185 = vmatmul.mubr.bf16.gmra.mrb[0].mxu0 %v1133
        %v1186 = vpop.f32.mrb[0].mxu0
        %v1187 = vadd.f32 0.0, %v1186
        %v1188 = vpop.f32.mrb[0].mxu0
        %v1189 = vpop.f32.mrb[0].mxu0
        %v1190 = vadd.f32 0.0, %v1189
        %v1191 = vpop.f32.mrb[0].mxu0
        %1192 = vmatprep.mubr.bf16.mxu0 0
        %1193 = vmatmul.mubr.bf16.gmra.mrb[0].mxu0 %v1136
        %v1194 = vpop.f32.mrb[0].mxu0
        %v1195 = vadd.f32 0.0, %v1194
        %v1196 = vpop.f32.mrb[0].mxu0
        %v1197 = vpop.f32.mrb[0].mxu0
        %v1198 = vadd.f32 0.0, %v1197
        %v1199 = vpop.f32.mrb[0].mxu0
        %1200 = vmatprep.mubr.bf16.mxu0 0
        %1201 = vmatmul.mubr.bf16.gmra.mrb[0].mxu0 %v1139
        %v1202 = vpop.f32.mrb[0].mxu0
        %v1203 = vadd.f32 0.0, %v1202
        %v1204 = vpop.f32.mrb[0].mxu0
        %v1205 = vpop.f32.mrb[0].mxu0
        %v1206 = vadd.f32 0.0, %v1205
        %v1207 = vpop.f32.mrb[0].mxu0
        %1208 = vdwg.mxu0
        %v1210 = vunpack.c.l.b16 %v476
        %v1211 = vpack.c.b16 %v700, %v699
        %v1212 = vpack.c.b16 %v702, %v701
        %v1213 = vpack.c.b16 %v704, %v703
        %v1214 = vpack.c.b16 %v1210, %v705
        %v1216 = vsel %vm608, %v1211, 0
        %v1219 = vsel %vm608, %v1212, 0
        %v1222 = vsel %vm608, %v1213, 0
        %v1225 = vsel %vm608, %v1214, 0
        %v1228 = vsel %vm621, %v1121, 0
        %1230 = vmatprep.subr.bf16.mxu0 0
        %1231 = vmatpush1.bf16.msra.mxu0 %v1228
        %1232 = vmatprep.subr.bf16.mxu0 0
        %1233 = vmatpush1.bf16.msra.mxu0 0
        %1234 = vmatprep.subr.bf16.mxu0 0
        %1235 = vmatpush1.bf16.msra.mxu0 0
        %1236 = vmatprep.subr.bf16.mxu0 0
        %1237 = vmatpush1.bf16.msra.mxu0 0
        %1238 = vmatprep.subr.bf16.mxu0 0
        %1239 = vmatpush1.bf16.msra.mxu0 0
        %1240 = vmatprep.subr.bf16.mxu0 0
        %1241 = vmatpush1.bf16.msra.mxu0 0
        %1242 = vmatprep.subr.bf16.mxu0 0
        %1243 = vmatpush1.bf16.msra.mxu0 0
        %1244 = vmatprep.subr.bf16.mxu0 0
        %1245 = vmatpush1.bf16.msra.mxu0 0
        %1246 = vmatprep.subr.bf16.mxu0 0
        %1247 = vmatpush1.bf16.msra.mxu0 0
        %1248 = vmatprep.subr.bf16.mxu0 0
        %1249 = vmatpush1.bf16.msra.mxu0 0
        %1250 = vmatprep.subr.bf16.mxu0 0
        %1251 = vmatpush1.bf16.msra.mxu0 0
        %1252 = vmatprep.subr.bf16.mxu0 0
        %1253 = vmatpush1.bf16.msra.mxu0 0
        %1254 = vmatprep.subr.bf16.mxu0 0
        %1255 = vmatpush1.bf16.msra.mxu0 0
        %1256 = vmatprep.subr.bf16.mxu0 0
        %1257 = vmatpush1.bf16.msra.mxu0 0
        %1258 = vmatprep.subr.bf16.mxu0 0
        %1259 = vmatpush1.bf16.msra.mxu0 0
        %1260 = vmatprep.subr.bf16.mxu0 0
        %1261 = vmatpush1.bf16.msra.mxu0 0
        %1262 = vmatprep.mubr.bf16.mxu0 0
        %1263 = vmatmul.mubr.bf16.gmra.mrb[0].mxu0 %v1216
        %v1264 = vpop.f32.mrb[0].mxu0
        %v1265 = vadd.f32 %v1179, %v1264
        %v1266 = vpop.f32.mrb[0].mxu0
        %v1267 = vpop.f32.mrb[0].mxu0
        %v1268 = vadd.f32 %v1182, %v1267
        %v1269 = vpop.f32.mrb[0].mxu0
        %1270 = vmatprep.mubr.bf16.mxu0 0
        %1271 = vmatmul.mubr.bf16.gmra.mrb[0].mxu0 %v1219
        %v1272 = vpop.f32.mrb[0].mxu0
        %v1273 = vadd.f32 %v1187, %v1272
        %v1274 = vpop.f32.mrb[0].mxu0
        %v1275 = vpop.f32.mrb[0].mxu0
        %v1276 = vadd.f32 %v1190, %v1275
        %v1277 = vpop.f32.mrb[0].mxu0
        %1278 = vmatprep.mubr.bf16.mxu0 0
        %1279 = vmatmul.mubr.bf16.gmra.mrb[0].mxu0 %v1222
        %v1280 = vpop.f32.mrb[0].mxu0
        %v1281 = vadd.f32 %v1195, %v1280
        %v1282 = vpop.f32.mrb[0].mxu0
        %v1283 = vpop.f32.mrb[0].mxu0
        %v1284 = vadd.f32 %v1198, %v1283
        %v1285 = vpop.f32.mrb[0].mxu0
        %1286 = vmatprep.mubr.bf16.mxu0 0
        %1287 = vmatmul.mubr.bf16.gmra.mrb[0].mxu0 %v1225
        %v1288 = vpop.f32.mrb[0].mxu0
        %v1289 = vadd.f32 %v1203, %v1288
        %v1290 = vpop.f32.mrb[0].mxu0
        %v1291 = vpop.f32.mrb[0].mxu0
        %v1292 = vadd.f32 %v1206, %v1291
        %v1293 = vpop.f32.mrb[0].mxu0
        %1294 = vdwg.mxu0
        %v1295 = vadd.f32 %v1098, %v1265
        %v1296 = vadd.f32 %v1099, %v1268
        %v1297 = vadd.f32 %v1100, %v1273
        %v1298 = vadd.f32 %v1101, %v1276
        %v1299 = vadd.f32 %v1102, %v1281
        %v1300 = vadd.f32 %v1103, %v1284
        %v1301 = vadd.f32 %v1104, %v1289
        %v1302 = vadd.f32 %v1105, %v1292
        %v1303 = vld [vmem:[%s4] sm:$0x1]
        %v1305 = vlaneseq
        %v1306 = vshrl.u32 %v1305, 7
        %v1307 = vsub.s32 0, %v1306
        %v1308 = vrot.slane %v1303, %v1307
        %v1310 = vadd.f32 %v1295, %v1308
        %v1311 = vadd.f32 %v1296, %v1308
        %v1312 = vadd.f32 %v1297, %v1308
        %v1313 = vadd.f32 %v1298, %v1308
        %v1314 = vadd.f32 %v1299, %v1308
        %v1315 = vadd.f32 %v1300, %v1308
        %v1316 = vadd.f32 %v1301, %v1308
        %v1317 = vadd.f32 %v1302, %v1308
        %v1318 = vmax.f32 %v1310, 0.0
        %v1319 = vmax.f32 %v1311, 0.0
        %v1320 = vmax.f32 %v1312, 0.0
        %v1321 = vmax.f32 %v1313, 0.0
        %v1322 = vmax.f32 %v1314, 0.0
        %v1323 = vmax.f32 %v1315, 0.0
        %v1324 = vmax.f32 %v1316, 0.0
        %v1325 = vmax.f32 %v1317, 0.0
        %v1326 = vpack.c.bf16 %v1319, %v1318
        %v1327 = vpack.c.bf16 %v1321, %v1320
        %v1328 = vpack.c.bf16 %v1323, %v1322
        %v1329 = vpack.c.bf16 %v1325, %v1324
        %v1330 = vld [vmem:[%s442] sm:$0xf]
        %v1331 = vpack.c.bf16 %v1330, %v1330
        %v1332 = vld [vmem:[%s5] sm:$0xf]
        %v1333 = vld [vmem:[%s6] sm:$0xf]
        %vm1334 = vcmask 31744
        %v1336 = vsel %vm1334, %v1333, 0
        %vm1338 = vcmask 1041408
        %v1340 = vsel %vm1338, %v1331, 0
        %1342 = vmatprep.subr.bf16.mxu0 0
        %1343 = vmatpush1.bf16.msra.mxu0 %v1340
        %1344 = vmatprep.subr.bf16.mxu0 0
        %1345 = vmatpush1.bf16.msra.mxu0 0
        %1346 = vmatprep.subr.bf16.mxu0 0
        %1347 = vmatpush1.bf16.msra.mxu0 0
        %1348 = vmatprep.subr.bf16.mxu0 0
        %1349 = vmatpush1.bf16.msra.mxu0 0
        %1350 = vmatprep.subr.bf16.mxu0 0
        %1351 = vmatpush1.bf16.msra.mxu0 0
        %1352 = vmatprep.subr.bf16.mxu0 0
        %1353 = vmatpush1.bf16.msra.mxu0 0
        %1354 = vmatprep.subr.bf16.mxu0 0
        %1355 = vmatpush1.bf16.msra.mxu0 0
        %1356 = vmatprep.subr.bf16.mxu0 0
        %1357 = vmatpush1.bf16.msra.mxu0 0
        %1358 = vmatprep.subr.bf16.mxu0 0
        %1359 = vmatpush1.bf16.msra.mxu0 0
        %1360 = vmatprep.subr.bf16.mxu0 0
        %1361 = vmatpush1.bf16.msra.mxu0 0
        %1362 = vmatprep.subr.bf16.mxu0 0
        %1363 = vmatpush1.bf16.msra.mxu0 0
        %1364 = vmatprep.subr.bf16.mxu0 0
        %1365 = vmatpush1.bf16.msra.mxu0 0
        %1366 = vmatprep.subr.bf16.mxu0 0
        %1367 = vmatpush1.bf16.msra.mxu0 0
        %1368 = vmatprep.subr.bf16.mxu0 0
        %1369 = vmatpush1.bf16.msra.mxu0 0
        %1370 = vmatprep.subr.bf16.mxu0 0
        %1371 = vmatpush1.bf16.msra.mxu0 0
        %1372 = vmatprep.subr.bf16.mxu0 0
        %1373 = vmatpush1.bf16.msra.mxu0 0
        %1374 = vmatprep.mubr.bf16.mxu0 0
        %1375 = vmatmul.mubr.bf16.gmra.mrb[0].mxu0 %v1336
        %v1376 = vpop.f32.mrb[0].mxu0
        %v1377 = vadd.f32 0.0, %v1376
        %v1378 = vpop.f32.mrb[0].mxu0
        %v1379 = vpop.f32.mrb[0].mxu0
        %v1380 = vpop.f32.mrb[0].mxu0
        %1381 = vdwg.mxu0
        %v1383 = vsel %vm1334, %v1332, 0
        %v1386 = vsel %vm1334, %v1326, 0
        %v1389 = vsel %vm1334, %v1327, 0
        %v1392 = vsel %vm1334, %v1328, 0
        %v1395 = vsel %vm1334, %v1329, 0
        %1397 = vmatprep.subr.bf16.mxu0 0
        %1398 = vmatpush1.bf16.xpose.msra.mxu0 %v1386
        %1399 = vmatprep.subr.bf16.mxu0 0
        %1400 = vmatpush1.bf16.xpose.msra.mxu0 %v1389
        %1401 = vmatprep.subr.bf16.mxu0 0
        %1402 = vmatpush1.bf16.xpose.msra.mxu0 %v1392
        %1403 = vmatprep.subr.bf16.mxu0 0
        %1404 = vmatpush1.bf16.xpose.msra.mxu0 %v1395
        %1405 = vmatprep.subr.bf16.mxu0 0
        %1406 = vmatpush1.bf16.xpose.msra.mxu0 0
        %1407 = vmatprep.subr.bf16.mxu0 0
        %1408 = vmatpush1.bf16.xpose.msra.mxu0 0
        %1409 = vmatprep.subr.bf16.mxu0 0
        %1410 = vmatpush1.bf16.xpose.msra.mxu0 0
        %1411 = vmatprep.subr.bf16.mxu0 0
        %1412 = vmatpush1.bf16.xpose.msra.mxu0 0
        %1413 = vmatprep.subr.bf16.mxu0 0
        %1414 = vmatpush1.bf16.xpose.msra.mxu0 0
        %1415 = vmatprep.subr.bf16.mxu0 0
        %1416 = vmatpush1.bf16.xpose.msra.mxu0 0
        %1417 = vmatprep.subr.bf16.mxu0 0
        %1418 = vmatpush1.bf16.xpose.msra.mxu0 0
        %1419 = vmatprep.subr.bf16.mxu0 0
        %1420 = vmatpush1.bf16.xpose.msra.mxu0 0
        %1421 = vmatprep.subr.bf16.mxu0 0
        %1422 = vmatpush1.bf16.xpose.msra.mxu0 0
        %1423 = vmatprep.subr.bf16.mxu0 0
        %1424 = vmatpush1.bf16.xpose.msra.mxu0 0
        %1425 = vmatprep.subr.bf16.mxu0 0
        %1426 = vmatpush1.bf16.xpose.msra.mxu0 0
        %1427 = vmatprep.subr.bf16.mxu0 0
        %1428 = vmatpush1.bf16.xpose.msra.mxu0 0
        %1429 = vmatprep.mubr.bf16.mxu0 0
        %1430 = vmatmul.mubr.bf16.gmra.mrb[0].mxu0 %v1383
        %v1431 = vpop.f32.mrb[0].mxu0
        %v1432 = vadd.f32 %v1377, %v1431
        %v1433 = vpop.f32.mrb[0].mxu0
        %v1434 = vpop.f32.mrb[0].mxu0
        %v1435 = vpop.f32.mrb[0].mxu0
        %1436 = vdwg.mxu0
        %v1437 = vld [vmem:[%s7] sm:$0xff]
        %1439 = vset.pattern.permute.xlu0 0
        %1440 = vperm.xlu0 %1439, %v1437
        %v1441 = vpop.permute.xlu0 %1440
        %v1443 = vadd.f32 %v1432, %v1441
        %v1444 = vmax.f32 %v1443, 0.0
        %vm1445 = vcmask 523264
        %1446 = vst.msk [vmem:[%s399] sm:$0xff] %vm1445, %v1444
        %s1447 = sand.u32 %s237, 1
        %s1448 = scalar_lea.sflag [#allocation3], %s1447
        %s1449 = sand.u32 %s237, 1
        %s1450 = smul.addr %s1449, 8
        %s1451 = scalar_lea.vmem [#allocation2], %s1450
        // Predicated region
        $region53: #{tpu_custom_call.1} parent=51 // pred_check
          %p1452 = pneg %p247
        $region54: #{tpu_custom_call.1} parent=51 // pred_check_branch
          %1454 = sbr.rel (%p1452) target = $region56
        $region55: #{tpu_custom_call.1} parent=51 // pred_region
          %s1456 = ssub.s32 128, 128
          %1457 = vsyncadd %s1448, %s1456
          %s1458 = sadd.s32 %s27, %s26
          %s1459 = smul.addr %s1458, 128
          %s1460 = scalar_lea.hbm %s8, %s1459
          %s1462 = sshll.u32 %s1451, 4
          %s1463 = int_to_ptr.vmem [resolvable:$true] %s1462
          %1465 = dma.vmem_to_hbm [thread:$0]  %s1463, 128, %s1460, %s1448
        $region56: #{tpu_custom_call.1} parent=51 // pred_fallthru
          _
      $region52: #{tpu_custom_call.1} parent=5 // pred_fallthru
        _
      %p1466 = scmp.le.s32.totalorder 2, %s17
      // Predicated region
      $region57: #{tpu_custom_call.1} parent=5 // pred_check
        %p1467 = pneg %p1466
      $region58: #{tpu_custom_call.1} parent=5 // pred_check_branch
        %1469 = sbr.rel (%p1467) target = $region60
      $region59: #{tpu_custom_call.1} parent=5 // pred_region
        %s1470 = ssub.s32 %s17, 2
        // Predicated region
        $region61: #{tpu_custom_call.1} parent=59 // pred_check
          %p1471 = pneg %p253
        $region62: #{tpu_custom_call.1} parent=59 // pred_check_branch
          %1473 = sbr.rel (%p1471) target = $region64
        $region63: #{tpu_custom_call.1} parent=59 // pred_region
          %s1474 = sand.u32 %s238, 1
          %s1475 = scalar_lea.sflag [#allocation3], %s1474
          %s1476 = sand.u32 %s238, 1
          %s1477 = smul.addr %s1476, 8
          %s1478 = scalar_lea.vmem [#allocation2], %s1477
          %1479 = dma.done %s1475, 128
        $region64: #{tpu_custom_call.1} parent=59 // pred_fallthru
          _
      $region60: #{tpu_custom_call.1} parent=5 // pred_fallthru
        _
    $region6: #{tpu_custom_call.1} parent=1 // loop_footer
      %s21 = sadd.s32 1, %s17
    $region7: #{tpu_custom_call.1} parent=1 // loop_footer_branch
      %16 = sbr.rel target = $region3
    $region8: #{tpu_custom_call.1} parent=1 // loop_exit
      _
    %1480 = vsyncpa [#allocation3], 1
    %s1481 = scalar_lea.sflag [#allocation3], 1
    %1482 = vsyncpa %s1481, 1

</llo_original>
